<compile_context>
chip_gen: v6e
topology: v6e:2x2x1
jax: 0.10.0
libtpu: 0.0.40
codegen_flags: <defaults>
</compile_context>

<pallas_src>
import functools
import math

import jax
import jax.numpy as jnp
from jax.experimental import pallas as pl
from jax.experimental.pallas import tpu as pltpu


def _round_up(x, m):
    return (x + m - 1) // m * m


def _tpu_limits():
    """(max batch tile, double-buffered emb-tile budget, vmem_limit cap) per generation."""
    try:
        kind = jax.devices()[0].device_kind.lower()
    except Exception:
        kind = ""
    if "v5 lite" in kind or "v5e" in kind:
        # ~0.82 TB/s HBM -> bigger tiles to hide per-step overhead; 128-row MXU; 128 MiB VMEM.
        return 128, 24 * 2**20, 96 * 2**20
    if "v6" in kind:
        # 128 MiB VMEM, 256-row MXU -> let TB reach 128-256 for large batches.
        return 256, 40 * 2**20, 96 * 2**20
    # v7x (64 MiB VMEM per TensorCore) and unknown chips: conservative budgets.
    return 256, 16 * 2**20, 48 * 2**20


def _pick_batch_tile(batch, pool_padded, hidden, budget_bytes, max_tile, min_steps=4):
    """Largest batch tile (multiple of 8) whose double-buffered f32 embedding tile
    (2 * TB * H * Pp * 4B) stays under budget, then shrunk until the grid has at least
    `min_steps` steps so the pipeline actually overlaps DMA with compute."""
    b8 = _round_up(max(batch, 1), 8)
    tb = 8
    while (tb * 2 <= min(b8, max_tile)
           and 2 * (tb * 2) * pool_padded * hidden * 4 <= budget_bytes):
        tb *= 2
    while tb > 8 and -(-b8 // tb) < min_steps:
        tb //= 2
    return tb


def _knowledge_score_kernel(emb_ref, agent_ref, att_ref, vl_ref,     # batch-tiled inputs
                            wk_ref, bk_ref, ws_ref, bs_ref,          # resident weights
                            act_ref, score_ref,                      # batch-tiled outputs
                            *, mask_value, inv_sqrt_hh, pool):
    agent = agent_ref[...]                                                     # (TB, Hh)

    # ---- agent_state folded into knowledge_layer (no (TB,P,Hh) intermediate) ----
    #   scaled[b,p] = (emb[b,:,p] . (agent[b,:] @ Wk) + agent[b,:] . bk) / sqrt(Hh)
    v = jnp.dot(agent, wk_ref[...], preferred_element_type=jnp.float32)        # (TB, H)
    c = jnp.sum(agent * bk_ref[...], axis=-1, keepdims=True)                   # (TB, 1)
    # emb block is (TB, H, Pp): Pp on lanes, H on sublanes -> reduce over H is VALU adds.
    scaled = (jnp.sum(emb_ref[...] * v[:, :, None], axis=1) + c) * inv_sqrt_hh  # (TB, Pp)

    # ---- knowledge_score_layer: Linear(P -> P) on the attention vector (MXU) ----
    att_proj = jnp.dot(att_ref[...], ws_ref[...],
                       preferred_element_type=jnp.float32) + bs_ref[...]        # (TB, Pp)

    result = att_proj * scaled

    # ---- padding mask: one vectorized compare against the per-row valid lengths ----
    pos = jax.lax.broadcasted_iota(jnp.int32, result.shape, 1)
    masked = jnp.where(pos >= vl_ref[...], jnp.float32(mask_value), result)
    act_ref[...] = masked

    # ---- softmax over the original pool width (lane-padding columns contribute exactly 0,
    #      independent of mask_value); exact divide since score can feed a loss ----
    soft_in = jnp.where(pos >= pool, -jnp.inf, masked)
    m = jnp.max(soft_in, axis=-1, keepdims=True)
    e = jnp.exp(soft_in - m)
    score_ref[...] = e / jnp.sum(e, axis=-1, keepdims=True)


def knowledge_score_pallas(embeddings_hp, agent_state, attention, valid_len,
                           wk, bk, ws, bs, *, mask_value, batch_tile=None):
    """Pallas implementation of KnowledgeSelector.knowledge_score -> (activations, score).

    `embeddings_hp` must be (B, H, P) with the pool axis last.  If P is a multiple of 128
    (producer emits a lane-padded pool) the biggest tensor is streamed with zero extra copies.
    """
    B, H, P = embeddings_hp.shape
    Hh = agent_state.shape[-1]

    Pp = _round_up(P, 128)                               # lane-dense pool axis
    max_tile, emb_budget, vmem_cap = _tpu_limits()
    TB = batch_tile or _pick_batch_tile(B, Pp, H, emb_budget, max_tile)
    Bp = _round_up(B, TB)

    f32 = jnp.float32
    emb_p = embeddings_hp.astype(f32)
    if Pp != P or Bp != B:
        # One extra pass over the largest tensor; producers should emit (B, H, Pp) already
        # lane-padded (and a TB-multiple batch) to make this a no-op.
        emb_p = jnp.pad(emb_p, ((0, Bp - B), (0, 0), (0, Pp - P)))
    agent_p = jnp.pad(agent_state.astype(f32), ((0, Bp - B), (0, 0)))
    att_p = jnp.pad(attention.astype(f32), ((0, Bp - B), (0, Pp - P)))
    vl_p = jnp.pad(valid_len.astype(jnp.int32), (0, Bp - B)).reshape(Bp, 1)
    wk_p = wk.astype(f32)                                             # (Hh, H)
    bk_p = bk.astype(f32).reshape(1, Hh)
    ws_p = jnp.pad(ws.astype(f32), ((0, Pp - P), (0, Pp - P)))
    bs_p = jnp.pad(bs.astype(f32), (0, Pp - P)).reshape(1, Pp)

    kernel = functools.partial(_knowledge_score_kernel,
                               mask_value=float(mask_value),
                               inv_sqrt_hh=1.0 / math.sqrt(Hh),
                               pool=P)

    batch1 = lambda b: (b, 0)
    batch3 = lambda b: (b, 0, 0)
    weight = lambda b: (0, 0)

    def build(single_buffer_weights):
        wkw = {"pipeline_mode": pl.Buffered(1)} if single_buffer_weights else {}
        w_bufs = 1 if single_buffer_weights else 2

        # Honest VMEM accounting: double-buffered streams, resident weights, double-buffered
        # outputs, plus the in-kernel (TB,H,Pp) broadcast product and softmax temporaries.
        emb_tile = TB * H * Pp * 4
        stream_in = 2 * (emb_tile + TB * Hh * 4 + TB * Pp * 4 + TB * 128 * 4)
        weights = w_bufs * 4 * (_round_up(Hh, 8) * H + 8 * _round_up(Hh, 128)
                                + Pp * Pp + 8 * Pp)
        outs = 2 * 2 * TB * Pp * 4
        temps = emb_tile + 6 * TB * Pp * 4
        need = stream_in + weights + outs + temps
        vmem_limit = int(min(max(need * 13 // 10, 16 * 2**20), vmem_cap))

        return pl.pallas_call(
            kernel,
            grid=(Bp // TB,),
            in_specs=[
                pl.BlockSpec((TB, H, Pp), batch3),            # embeddings (streamed)
                pl.BlockSpec((TB, Hh), batch1),               # agent_state
                pl.BlockSpec((TB, Pp), batch1),               # attention
                pl.BlockSpec((TB, 1), batch1),                # valid_len (vectorized mask)
                pl.BlockSpec((Hh, H), weight, **wkw),         # wk (resident)
                pl.BlockSpec((1, Hh), weight, **wkw),         # bk
                pl.BlockSpec((Pp, Pp), weight, **wkw),        # ws
                pl.BlockSpec((1, Pp), weight, **wkw),         # bs
            ],
            out_specs=(pl.BlockSpec((TB, Pp), batch1),
                       pl.BlockSpec((TB, Pp), batch1)),
            out_shape=(jax.ShapeDtypeStruct((Bp, Pp), jnp.float32),
                       jax.ShapeDtypeStruct((Bp, Pp), jnp.float32)),
            compiler_params=pltpu.CompilerParams(
                dimension_semantics=("parallel",),            # batch axis -> both TCs on v7x
                vmem_limit_bytes=vmem_limit),
        )

    args = (emb_p, agent_p, att_p, vl_p, wk_p, bk_p, ws_p, bs_p)
    try:
        act, score = build(True)(*args)
    except Exception:
        # pipeline_mode=pl.Buffered(1) unsupported in this jax build -> default buffering.
        act, score = build(False)(*args)

    return act[:B, :P], score[:B, :P]


def knowledge_score_ref(embeddings_bph, agent_state, attention, valid_len,
                        wk, bk, ws, bs, *, mask_value):
    """Pure-JAX reference mirroring the torch code path (embeddings in (B, P, H))."""
    Hh = agent_state.shape[-1]
    P = embeddings_bph.shape[1]
    new = jnp.einsum('bph,kh->bpk', embeddings_bph, wk) + bk             # knowledge_layer
    scaled = jnp.sum(agent_state[:, None, :] * new, axis=-1) / math.sqrt(Hh)
    att_proj = attention @ ws + bs                                       # knowledge_score_layer
    result = att_proj * scaled
    mask = jnp.arange(P)[None, :] >= valid_len[:, None]
    result = jnp.where(mask, mask_value, result)
    return result, jax.nn.softmax(result, axis=-1)


if __name__ == "__main__":
    # Small, deterministic shapes consistent with the module.  base_poolsize is lane-padded
    # to 128 inside the wrapper; the batch is tiled (TB=8 here -> 3 pipelined grid steps).
    B = 24               # batch
    hidden_dim = 64      # H
    half_dim = hidden_dim // 2
    base_poolsize = 96   # P
    mask_value = -1e4    # self.mask fill value

    key = jax.random.PRNGKey(0)
    k_emb, k_agent, k_att, k_wk, k_bk, k_ws, k_bs, k_len = jax.random.split(key, 8)

    # Valid lengths per sample (rest is padding, as produced by `padding(candidate, pad=0)`).
    valid_len = jax.random.randint(k_len, (B,), minval=base_poolsize // 2,
                                   maxval=base_poolsize + 1).astype(jnp.int32)
    pos = jnp.arange(base_poolsize)[None, :]
    valid = (pos < valid_len[:, None]).astype(jnp.float32)

    embeddings = jax.random.normal(k_emb, (B, base_poolsize, hidden_dim), jnp.float32)
    embeddings = embeddings * valid[:, :, None]                          # zero-pad like `padding`
    # Producer-side lane-dense layout expected by the kernel: (B, H, P) with pool last.
    embeddings_hp = jnp.transpose(embeddings, (0, 2, 1))
    agent_state = jax.random.normal(k_agent, (B, half_dim), jnp.float32)
    attention = jax.random.uniform(k_att, (B, base_poolsize), jnp.float32) * valid

    # RepresentationLayer parameters (deterministic synthetic init).
    wk = jax.random.normal(k_wk, (half_dim, hidden_dim), jnp.float32) * 0.1   # torch (out,in)
    bk = jax.random.normal(k_bk, (half_dim,), jnp.float32) * 0.1
    ws = jax.random.normal(k_ws, (base_poolsize, base_poolsize), jnp.float32) * 0.1  # (in,out)
    bs = jax.random.normal(k_bs, (base_poolsize,), jnp.float32) * 0.1

    act, score = knowledge_score_pallas(embeddings_hp, agent_state, attention, valid_len,
                                        wk, bk, ws, bs, mask_value=mask_value)
    jax.block_until_ready((act, score))

    act_ref, score_ref_ = knowledge_score_ref(embeddings, agent_state, attention, valid_len,
                                              wk, bk, ws, bs, mask_value=mask_value)
    # act: exact math, only summation-order differences from the agent-state fold.
    assert jnp.allclose(act, act_ref, atol=2e-3, rtol=2e-3)
    # score: exact-divide softmax over the original pool width.
    assert jnp.allclose(score, score_ref_, atol=1e-3, rtol=1e-2)

    print("KERNEL_OK")
</pallas_src>

<mosaic_0001>
module attributes {stable_mosaic.version = 11 : i64} {
  func.func @_knowledge_score_kernel(%arg0: i32, %arg1: memref<8x64x128xf32, #tpu.memory_space<vmem>>, %arg2: memref<8x32xf32, #tpu.memory_space<vmem>>, %arg3: memref<8x128xf32, #tpu.memory_space<vmem>>, %arg4: memref<8x1xi32, #tpu.memory_space<vmem>>, %arg5: memref<32x64xf32, #tpu.memory_space<vmem>>, %arg6: memref<1x32xf32, #tpu.memory_space<vmem>>, %arg7: memref<128x128xf32, #tpu.memory_space<vmem>>, %arg8: memref<1x128xf32, #tpu.memory_space<vmem>>, %arg9: memref<8x128xf32, #tpu.memory_space<vmem>>, %arg10: memref<8x128xf32, #tpu.memory_space<vmem>>) attributes {dimension_semantics = [#tpu.dimension_semantics<parallel>], iteration_bounds = array<i64: 3>, scalar_prefetch = 0 : i64, scratch_operands = 0 : i64, tpu.core_type = #tpu.core_type<tc>, window_params = [{transform_indices = @transform_0, window_bounds = array<i64: 8, 64, 128>}, {transform_indices = @transform_1, window_bounds = array<i64: 8, 32>}, {transform_indices = @transform_2, window_bounds = array<i64: 8, 128>}, {transform_indices = @transform_3, window_bounds = array<i64: 8, 1>}, {pipeline_mode = #tpu.pipeline_mode<synchronous>, transform_indices = @transform_4, window_bounds = array<i64: 32, 64>}, {pipeline_mode = #tpu.pipeline_mode<synchronous>, transform_indices = @transform_5, window_bounds = array<i64: 1, 32>}, {pipeline_mode = #tpu.pipeline_mode<synchronous>, transform_indices = @transform_6, window_bounds = array<i64: 128, 128>}, {pipeline_mode = #tpu.pipeline_mode<synchronous>, transform_indices = @transform_7, window_bounds = array<i64: 1, 128>}, {transform_indices = @transform_8, window_bounds = array<i64: 8, 128>}, {transform_indices = @transform_9, window_bounds = array<i64: 8, 128>}]} {
    %c0 = arith.constant 0 : index
    %c0_0 = arith.constant 0 : index
    %0 = vector.load %arg2[%c0, %c0_0] : memref<8x32xf32, #tpu.memory_space<vmem>>, vector<8x32xf32>
    %c0_1 = arith.constant 0 : index
    %c0_2 = arith.constant 0 : index
    %1 = vector.load %arg5[%c0_1, %c0_2] : memref<32x64xf32, #tpu.memory_space<vmem>>, vector<32x64xf32>
    %cst = arith.constant dense<0.000000e+00> : vector<8x64xf32>
    %2 = tpu.matmul %0, %1, %cst {dimension_numbers = #tpu.dot_dimension_numbers<[1], [0], [0], [1], [0, 0, 1, 1], [], []>} : vector<8x32xf32>, vector<32x64xf32>, vector<8x64xf32> -> vector<8x64xf32>
    %c0_3 = arith.constant 0 : index
    %c0_4 = arith.constant 0 : index
    %3 = vector.load %arg6[%c0_3, %c0_4] : memref<1x32xf32, #tpu.memory_space<vmem>>, vector<1x32xf32>
    %4 = vector.broadcast %3 : vector<1x32xf32> to vector<8x32xf32>
    %5 = arith.mulf %0, %4 : vector<8x32xf32>
    %cst_5 = arith.constant dense<0.000000e+00> : vector<8xf32>
    %6 = vector.multi_reduction <add>, %5, %cst_5 [1] : vector<8x32xf32> to vector<8xf32>
    %7 = vector.shape_cast %6 : vector<8xf32> to vector<8x1xf32>
    %c0_6 = arith.constant 0 : index
    %c0_7 = arith.constant 0 : index
    %c0_8 = arith.constant 0 : index
    %8 = vector.load %arg1[%c0_6, %c0_7, %c0_8] : memref<8x64x128xf32, #tpu.memory_space<vmem>>, vector<8x64x128xf32>
    %9 = vector.shape_cast %2 : vector<8x64xf32> to vector<8x64x1xf32>
    %10 = vector.broadcast %9 : vector<8x64x1xf32> to vector<8x64x128xf32>
    %11 = arith.mulf %8, %10 : vector<8x64x128xf32>
    %cst_9 = arith.constant dense<0.000000e+00> : vector<8x128xf32>
    %12 = vector.multi_reduction <add>, %11, %cst_9 [1] : vector<8x64x128xf32> to vector<8x128xf32>
    %13 = vector.broadcast %7 : vector<8x1xf32> to vector<8x128xf32>
    %14 = arith.addf %12, %13 : vector<8x128xf32>
    %cst_10 = arith.constant 0.176776692 : f32
    %15 = vector.broadcast %cst_10 : f32 to vector<8x128xf32>
    %16 = arith.mulf %14, %15 : vector<8x128xf32>
    %c0_11 = arith.constant 0 : index
    %c0_12 = arith.constant 0 : index
    %17 = vector.load %arg3[%c0_11, %c0_12] : memref<8x128xf32, #tpu.memory_space<vmem>>, vector<8x128xf32>
    %c0_13 = arith.constant 0 : index
    %c0_14 = arith.constant 0 : index
    %18 = vector.load %arg7[%c0_13, %c0_14] : memref<128x128xf32, #tpu.memory_space<vmem>>, vector<128x128xf32>
    %cst_15 = arith.constant dense<0.000000e+00> : vector<8x128xf32>
    %19 = tpu.matmul %17, %18, %cst_15 {dimension_numbers = #tpu.dot_dimension_numbers<[1], [0], [0], [1], [0, 0, 1, 1], [], []>} : vector<8x128xf32>, vector<128x128xf32>, vector<8x128xf32> -> vector<8x128xf32>
    %c0_16 = arith.constant 0 : index
    %c0_17 = arith.constant 0 : index
    %20 = vector.load %arg8[%c0_16, %c0_17] : memref<1x128xf32, #tpu.memory_space<vmem>>, vector<1x128xf32>
    %21 = vector.broadcast %20 : vector<1x128xf32> to vector<8x128xf32>
    %22 = arith.addf %19, %21 : vector<8x128xf32>
    %23 = arith.mulf %22, %16 : vector<8x128xf32>
    %24 = tpu.iota {dimensions = array<i32: 1>} : vector<8x128xi32>
    %c0_18 = arith.constant 0 : index
    %c0_19 = arith.constant 0 : index
    %25 = vector.load %arg4[%c0_18, %c0_19] : memref<8x1xi32, #tpu.memory_space<vmem>>, vector<8x1xi32>
    %26 = vector.broadcast %25 : vector<8x1xi32> to vector<8x128xi32>
    %27 = arith.cmpi sge, %24, %26 : vector<8x128xi32>
    %cst_20 = arith.constant -1.000000e+04 : f32
    %28 = vector.broadcast %cst_20 : f32 to vector<8x128xf32>
    %29 = arith.select %27, %28, %23 : vector<8x128xi1>, vector<8x128xf32>
    %c0_21 = arith.constant 0 : index
    %c0_22 = arith.constant 0 : index
    %30 = vector.load %arg9[%c0_21, %c0_22] : memref<8x128xf32, #tpu.memory_space<vmem>>, vector<8x128xf32>
    tpu.vector_store %arg9[%c0_21, %c0_22], %29 {strides = array<i32>} : memref<8x128xf32, #tpu.memory_space<vmem>>, vector<8x128xf32>,
    %c96_i32 = arith.constant 96 : i32
    %31 = vector.broadcast %c96_i32 : i32 to vector<8x128xi32>
    %32 = arith.cmpi sge, %24, %31 : vector<8x128xi32>
    %cst_23 = arith.constant 0xFF800000 : f32
    %33 = vector.broadcast %cst_23 : f32 to vector<8x128xf32>
    %34 = arith.select %32, %33, %29 : vector<8x128xi1>, vector<8x128xf32>
    %cst_24 = arith.constant dense<0xFF800000> : vector<8xf32>
    %35 = vector.multi_reduction <maximumf>, %34, %cst_24 [1] : vector<8x128xf32> to vector<8xf32>
    %36 = vector.shape_cast %35 : vector<8xf32> to vector<8x1xf32>
    %37 = vector.broadcast %36 : vector<8x1xf32> to vector<8x128xf32>
    %38 = arith.subf %34, %37 : vector<8x128xf32>
    %39 = math.exp %38 : vector<8x128xf32>
    %cst_25 = arith.constant dense<0.000000e+00> : vector<8xf32>
    %40 = vector.multi_reduction <add>, %39, %cst_25 [1] : vector<8x128xf32> to vector<8xf32>
    %41 = vector.shape_cast %40 : vector<8xf32> to vector<8x1xf32>
    %42 = vector.broadcast %41 : vector<8x1xf32> to vector<8x128xf32>
    %43 = arith.divf %39, %42 : vector<8x128xf32>
    %c0_26 = arith.constant 0 : index
    %c0_27 = arith.constant 0 : index
    %44 = vector.load %arg10[%c0_26, %c0_27] : memref<8x128xf32, #tpu.memory_space<vmem>>, vector<8x128xf32>
    tpu.vector_store %arg10[%c0_26, %c0_27], %43 {strides = array<i32>} : memref<8x128xf32, #tpu.memory_space<vmem>>, vector<8x128xf32>,
    return
  }
  func.func @transform_0(%arg0: i32) -> (i32, i32, i32) {
    %c0_i32 = arith.constant 0 : i32
    %c0_i32_0 = arith.constant 0 : i32
    %c0_i32_1 = arith.constant 0 : i32
    return %arg0, %c0_i32, %c0_i32_0 : i32, i32, i32
  }
  func.func @transform_1(%arg0: i32) -> (i32, i32) {
    %c0_i32 = arith.constant 0 : i32
    %c0_i32_0 = arith.constant 0 : i32
    return %arg0, %c0_i32 : i32, i32
  }
  func.func @transform_2(%arg0: i32) -> (i32, i32) {
    %c0_i32 = arith.constant 0 : i32
    %c0_i32_0 = arith.constant 0 : i32
    return %arg0, %c0_i32 : i32, i32
  }
  func.func @transform_3(%arg0: i32) -> (i32, i32) {
    %c0_i32 = arith.constant 0 : i32
    %c0_i32_0 = arith.constant 0 : i32
    return %arg0, %c0_i32 : i32, i32
  }
  func.func @transform_4(%arg0: i32) -> (i32, i32) {
    %c0_i32 = arith.constant 0 : i32
    %c0_i32_0 = arith.constant 0 : i32
    %c0_i32_1 = arith.constant 0 : i32
    return %c0_i32, %c0_i32_0 : i32, i32
  }
  func.func @transform_5(%arg0: i32) -> (i32, i32) {
    %c0_i32 = arith.constant 0 : i32
    %c0_i32_0 = arith.constant 0 : i32
    %c0_i32_1 = arith.constant 0 : i32
    return %c0_i32, %c0_i32_0 : i32, i32
  }
  func.func @transform_6(%arg0: i32) -> (i32, i32) {
    %c0_i32 = arith.constant 0 : i32
    %c0_i32_0 = arith.constant 0 : i32
    %c0_i32_1 = arith.constant 0 : i32
    return %c0_i32, %c0_i32_0 : i32, i32
  }
  func.func @transform_7(%arg0: i32) -> (i32, i32) {
    %c0_i32 = arith.constant 0 : i32
    %c0_i32_0 = arith.constant 0 : i32
    %c0_i32_1 = arith.constant 0 : i32
    return %c0_i32, %c0_i32_0 : i32, i32
  }
  func.func @transform_8(%arg0: i32) -> (i32, i32) {
    %c0_i32 = arith.constant 0 : i32
    %c0_i32_0 = arith.constant 0 : i32
    return %arg0, %c0_i32 : i32, i32
  }
  func.func @transform_9(%arg0: i32) -> (i32, i32) {
    %c0_i32 = arith.constant 0 : i32
    %c0_i32_0 = arith.constant 0 : i32
    return %arg0, %c0_i32 : i32, i32
  }
}

module attributes {stable_mosaic.version = 11 : i64} {
  func.func @_knowledge_score_kernel(%arg0: i32, %arg1: memref<8x64x128xf32, #tpu.memory_space<vmem>>, %arg2: memref<8x32xf32, #tpu.memory_space<vmem>>, %arg3: memref<8x128xf32, #tpu.memory_space<vmem>>, %arg4: memref<8x1xi32, #tpu.memory_space<vmem>>, %arg5: memref<32x64xf32, #tpu.memory_space<vmem>>, %arg6: memref<1x32xf32, #tpu.memory_space<vmem>>, %arg7: memref<128x128xf32, #tpu.memory_space<vmem>>, %arg8: memref<1x128xf32, #tpu.memory_space<vmem>>, %arg9: memref<8x128xf32, #tpu.memory_space<vmem>>, %arg10: memref<8x128xf32, #tpu.memory_space<vmem>>) attributes {dimension_semantics = [#tpu.dimension_semantics<parallel>], iteration_bounds = array<i64: 3>, scalar_prefetch = 0 : i64, scratch_operands = 0 : i64, tpu.core_type = #tpu.core_type<tc>, window_params = [{transform_indices = @transform_0, window_bounds = array<i64: 8, 64, 128>}, {transform_indices = @transform_1, window_bounds = array<i64: 8, 32>}, {transform_indices = @transform_2, window_bounds = array<i64: 8, 128>}, {transform_indices = @transform_3, window_bounds = array<i64: 8, 1>}, {pipeline_mode = #tpu.pipeline_mode<synchronous>, transform_indices = @transform_4, window_bounds = array<i64: 32, 64>}, {pipeline_mode = #tpu.pipeline_mode<synchronous>, transform_indices = @transform_5, window_bounds = array<i64: 1, 32>}, {pipeline_mode = #tpu.pipeline_mode<synchronous>, transform_indices = @transform_6, window_bounds = array<i64: 128, 128>}, {pipeline_mode = #tpu.pipeline_mode<synchronous>, transform_indices = @transform_7, window_bounds = array<i64: 1, 128>}, {transform_indices = @transform_8, window_bounds = array<i64: 8, 128>}, {transform_indices = @transform_9, window_bounds = array<i64: 8, 128>}]} {
    %c0 = arith.constant 0 : index
    %c0_0 = arith.constant 0 : index
    %0 = vector.load %arg2[%c0, %c0_0] : memref<8x32xf32, #tpu.memory_space<vmem>>, vector<8x32xf32>
    %c0_1 = arith.constant 0 : index
    %c0_2 = arith.constant 0 : index
    %1 = vector.load %arg5[%c0_1, %c0_2] : memref<32x64xf32, #tpu.memory_space<vmem>>, vector<32x64xf32>
    %cst = arith.constant dense<0.000000e+00> : vector<8x64xf32>
    %2 = tpu.matmul %0, %1, %cst {dimension_numbers = #tpu.dot_dimension_numbers<[1], [0], [0], [1], [0, 0, 1, 1], [], []>} : vector<8x32xf32>, vector<32x64xf32>, vector<8x64xf32> -> vector<8x64xf32>
    %c0_3 = arith.constant 0 : index
    %c0_4 = arith.constant 0 : index
    %3 = vector.load %arg6[%c0_3, %c0_4] : memref<1x32xf32, #tpu.memory_space<vmem>>, vector<1x32xf32>
    %4 = vector.broadcast %3 : vector<1x32xf32> to vector<8x32xf32>
    %5 = arith.mulf %0, %4 : vector<8x32xf32>
    %cst_5 = arith.constant dense<0.000000e+00> : vector<8xf32>
    %6 = vector.multi_reduction <add>, %5, %cst_5 [1] : vector<8x32xf32> to vector<8xf32>
    %7 = vector.shape_cast %6 : vector<8xf32> to vector<8x1xf32>
    %c0_6 = arith.constant 0 : index
    %c0_7 = arith.constant 0 : index
    %c0_8 = arith.constant 0 : index
    %8 = vector.load %arg1[%c0_6, %c0_7, %c0_8] : memref<8x64x128xf32, #tpu.memory_space<vmem>>, vector<8x64x128xf32>
    %9 = vector.shape_cast %2 : vector<8x64xf32> to vector<8x64x1xf32>
    %10 = vector.broadcast %9 : vector<8x64x1xf32> to vector<8x64x128xf32>
    %11 = arith.mulf %8, %10 : vector<8x64x128xf32>
    %cst_9 = arith.constant dense<0.000000e+00> : vector<8x128xf32>
    %12 = vector.multi_reduction <add>, %11, %cst_9 [1] : vector<8x64x128xf32> to vector<8x128xf32>
    %13 = vector.broadcast %7 : vector<8x1xf32> to vector<8x128xf32>
    %14 = arith.addf %12, %13 : vector<8x128xf32>
    %cst_10 = arith.constant 0.176776692 : f32
    %15 = vector.broadcast %cst_10 : f32 to vector<8x128xf32>
    %16 = arith.mulf %14, %15 : vector<8x128xf32>
    %c0_11 = arith.constant 0 : index
    %c0_12 = arith.constant 0 : index
    %17 = vector.load %arg3[%c0_11, %c0_12] : memref<8x128xf32, #tpu.memory_space<vmem>>, vector<8x128xf32>
    %c0_13 = arith.constant 0 : index
    %c0_14 = arith.constant 0 : index
    %18 = vector.load %arg7[%c0_13, %c0_14] : memref<128x128xf32, #tpu.memory_space<vmem>>, vector<128x128xf32>
    %cst_15 = arith.constant dense<0.000000e+00> : vector<8x128xf32>
    %19 = tpu.matmul %17, %18, %cst_15 {dimension_numbers = #tpu.dot_dimension_numbers<[1], [0], [0], [1], [0, 0, 1, 1], [], []>} : vector<8x128xf32>, vector<128x128xf32>, vector<8x128xf32> -> vector<8x128xf32>
    %c0_16 = arith.constant 0 : index
    %c0_17 = arith.constant 0 : index
    %20 = vector.load %arg8[%c0_16, %c0_17] : memref<1x128xf32, #tpu.memory_space<vmem>>, vector<1x128xf32>
    %21 = vector.broadcast %20 : vector<1x128xf32> to vector<8x128xf32>
    %22 = arith.addf %19, %21 : vector<8x128xf32>
    %23 = arith.mulf %22, %16 : vector<8x128xf32>
    %24 = tpu.iota {dimensions = array<i32: 1>} : vector<8x128xi32>
    %c0_18 = arith.constant 0 : index
    %c0_19 = arith.constant 0 : index
    %25 = vector.load %arg4[%c0_18, %c0_19] : memref<8x1xi32, #tpu.memory_space<vmem>>, vector<8x1xi32>
    %26 = vector.broadcast %25 : vector<8x1xi32> to vector<8x128xi32>
    %27 = arith.cmpi sge, %24, %26 : vector<8x128xi32>
    %cst_20 = arith.constant -1.000000e+04 : f32
    %28 = vector.broadcast %cst_20 : f32 to vector<8x128xf32>
    %29 = arith.select %27, %28, %23 : vector<8x128xi1>, vector<8x128xf32>
    %c0_21 = arith.constant 0 : index
    %c0_22 = arith.constant 0 : index
    %30 = vector.load %arg9[%c0_21, %c0_22] : memref<8x128xf32, #tpu.memory_space<vmem>>, vector<8x128xf32>
    tpu.vector_store %arg9[%c0_21, %c0_22], %29 {strides = array<i32>} : memref<8x128xf32, #tpu.memory_space<vmem>>, vector<8x128xf32>,
    %c96_i32 = arith.constant 96 : i32
    %31 = vector.broadcast %c96_i32 : i32 to vector<8x128xi32>
    %32 = arith.cmpi sge, %24, %31 : vector<8x128xi32>
    %cst_23 = arith.constant 0xFF800000 : f32
    %33 = vector.broadcast %cst_23 : f32 to vector<8x128xf32>
    %34 = arith.select %32, %33, %29 : vector<8x128xi1>, vector<8x128xf32>
    %cst_24 = arith.constant dense<0xFF800000> : vector<8xf32>
    %35 = vector.multi_reduction <maximumf>, %34, %cst_24 [1] : vector<8x128xf32> to vector<8xf32>
    %36 = vector.shape_cast %35 : vector<8xf32> to vector<8x1xf32>
    %37 = vector.broadcast %36 : vector<8x1xf32> to vector<8x128xf32>
    %38 = arith.subf %34, %37 : vector<8x128xf32>
    %39 = math.exp %38 : vector<8x128xf32>
    %cst_25 = arith.constant dense<0.000000e+00> : vector<8xf32>
    %40 = vector.multi_reduction <add>, %39, %cst_25 [1] : vector<8x128xf32> to vector<8xf32>
    %41 = vector.shape_cast %40 : vector<8xf32> to vector<8x1xf32>
    %42 = vector.broadcast %41 : vector<8x1xf32> to vector<8x128xf32>
    %43 = arith.divf %39, %42 : vector<8x128xf32>
    %c0_26 = arith.constant 0 : index
    %c0_27 = arith.constant 0 : index
    %44 = vector.load %arg10[%c0_26, %c0_27] : memref<8x128xf32, #tpu.memory_space<vmem>>, vector<8x128xf32>
    tpu.vector_store %arg10[%c0_26, %c0_27], %43 {strides = array<i32>} : memref<8x128xf32, #tpu.memory_space<vmem>>, vector<8x128xf32>,
    return
  }
  func.func @transform_0(%arg0: i32) -> (i32, i32, i32) {
    %c0_i32 = arith.constant 0 : i32
    %c0_i32_0 = arith.constant 0 : i32
    %c0_i32_1 = arith.constant 0 : i32
    return %arg0, %c0_i32, %c0_i32_0 : i32, i32, i32
  }
  func.func @transform_1(%arg0: i32) -> (i32, i32) {
    %c0_i32 = arith.constant 0 : i32
    %c0_i32_0 = arith.constant 0 : i32
    return %arg0, %c0_i32 : i32, i32
  }
  func.func @transform_2(%arg0: i32) -> (i32, i32) {
    %c0_i32 = arith.constant 0 : i32
    %c0_i32_0 = arith.constant 0 : i32
    return %arg0, %c0_i32 : i32, i32
  }
  func.func @transform_3(%arg0: i32) -> (i32, i32) {
    %c0_i32 = arith.constant 0 : i32
    %c0_i32_0 = arith.constant 0 : i32
    return %arg0, %c0_i32 : i32, i32
  }
  func.func @transform_4(%arg0: i32) -> (i32, i32) {
    %c0_i32 = arith.constant 0 : i32
    %c0_i32_0 = arith.constant 0 : i32
    %c0_i32_1 = arith.constant 0 : i32
    return %c0_i32, %c0_i32_0 : i32, i32
  }
  func.func @transform_5(%arg0: i32) -> (i32, i32) {
    %c0_i32 = arith.constant 0 : i32
    %c0_i32_0 = arith.constant 0 : i32
    %c0_i32_1 = arith.constant 0 : i32
    return %c0_i32, %c0_i32_0 : i32, i32
  }
  func.func @transform_6(%arg0: i32) -> (i32, i32) {
    %c0_i32 = arith.constant 0 : i32
    %c0_i32_0 = arith.constant 0 : i32
    %c0_i32_1 = arith.constant 0 : i32
    return %c0_i32, %c0_i32_0 : i32, i32
  }
  func.func @transform_7(%arg0: i32) -> (i32, i32) {
    %c0_i32 = arith.constant 0 : i32
    %c0_i32_0 = arith.constant 0 : i32
    %c0_i32_1 = arith.constant 0 : i32
    return %c0_i32, %c0_i32_0 : i32, i32
  }
  func.func @transform_8(%arg0: i32) -> (i32, i32) {
    %c0_i32 = arith.constant 0 : i32
    %c0_i32_0 = arith.constant 0 : i32
    return %arg0, %c0_i32 : i32, i32
  }
  func.func @transform_9(%arg0: i32) -> (i32, i32) {
    %c0_i32 = arith.constant 0 : i32
    %c0_i32_0 = arith.constant 0 : i32
    return %arg0, %c0_i32 : i32, i32
  }
}

</mosaic_0001>

<llo_original>
// kernel: tpu_custom_call.1
$region0: #{tpu_custom_call.1}
  #allocation0 [shape = 'u32[]', space=smem, size = 0x4, offset = 0x4, fixed_abs, tag = 'smem constant byte address 0x4 - core index']
  #allocation1 [shape = 'u32[144,128]{1,0:T(1,128)}', space=vmem, size = 0x12000, scoped, tag = 'internal scratch']
  %s0 = inlined_call_operand.hbm [shape: f32[24,64,128], index: 0, kind: input, shape index: {}]
  %s1 = inlined_call_operand.hbm [shape: f32[24,32], index: 1, kind: input, shape index: {}]
  %s2 = inlined_call_operand.hbm [shape: f32[24,128], index: 2, kind: input, shape index: {}]
  %s3 = inlined_call_operand.vmem [shape: s32[24,1], index: 3, kind: input, shape index: {}]
  %s4 = inlined_call_operand.vmem [shape: f32[32,64], index: 4, kind: input, shape index: {}]
  %s5 = inlined_call_operand.vmem [shape: f32[1,32], index: 5, kind: input, shape index: {}]
  %s6 = inlined_call_operand.hbm [shape: f32[128,128], index: 6, kind: input, shape index: {}]
  %s7 = inlined_call_operand.vmem [shape: f32[1,128], index: 7, kind: input, shape index: {}]
  %s8 = inlined_call_operand.hbm [shape: f32[24,128], index: 8, kind: output, shape index: {0}]
  %s9 = inlined_call_operand.hbm [shape: f32[24,128], index: 9, kind: output, shape index: {1}]
  %10 = xla_tuple %s8, %s9
  %s11 = sld [smem:[#allocation0]]
  $region89: #{tpu_custom_call.1} parent=0
    _
  %s13 = ssub.s32 1, %s11
  %s14 = scalar_select 0, %s13, %s11
  $region1: #{tpu_custom_call.1} parent=0
    #allocation2 [shape = 'u8[524288]{0}', space=vmem, size = 0x80000, scoped, tag = 'input window, operand 0']
    #allocation3 [shape = 's32[2]{0}', space=sflag, size = 0x8, scoped, tag = 'scoped memory for tpu_custom_call.1']
    #allocation4 [shape = 's32[2]{0}', space=sflag, size = 0x8, scoped, tag = 'scoped memory for tpu_custom_call.1']
    #allocation5 [shape = 'u8[8192]{0}', space=vmem, size = 0x2000, scoped, tag = 'input window, operand 1']
    #allocation6 [shape = 's32[2]{0}', space=sflag, size = 0x8, scoped, tag = 'scoped memory for tpu_custom_call.1']
    #allocation7 [shape = 'u8[8192]{0}', space=vmem, size = 0x2000, scoped, tag = 'input window, operand 2']
    #allocation8 [shape = 'u8[65536]{0}', space=vmem, size = 0x10000, scoped, tag = 'input window, operand 6, single buffered']
    #allocation9 [shape = 's32[1]{0}', space=sflag, size = 0x4, scoped, tag = 'scoped memory for tpu_custom_call.1']
    #allocation10 [shape = 'u8[8192]{0}', space=vmem, size = 0x2000, scoped, tag = 'output window, operand 0']
    #allocation11 [shape = 'u8[8192]{0}', space=vmem, size = 0x2000, scoped, tag = 'output window, operand 1']
    #allocation12 [shape = 's32[2]{0}', space=sflag, size = 0x8, scoped, tag = 'scoped memory for tpu_custom_call.1']
    %15 = vsyncpa [#allocation3], 0
    %s16 = scalar_lea.sflag [#allocation3], 1
    %17 = vsyncpa %s16, 0
    %18 = vsyncpa [#allocation6], 0
    %s19 = scalar_lea.sflag [#allocation6], 1
    %20 = vsyncpa %s19, 0
    %21 = vsyncpa [#allocation9], 0
    %22 = vsyncpa [#allocation4], 0
    %s23 = scalar_lea.sflag [#allocation4], 1
    %24 = vsyncpa %s23, 0
    %25 = vsyncpa [#allocation12], 0
    %s26 = scalar_lea.sflag [#allocation12], 1
    %27 = vsyncpa %s26, 0
    loop: start=0, step=1, limit=5
    $region2: #{tpu_custom_call.1} parent=1 // loop_pre_header
      _
    $region3: #{tpu_custom_call.1} parent=1 // loop_header
      %s29 = sphi 0, %s33
      %p30 = scmp.ge.s32.totalorder %s29, 5
      %s39 = sphi 0, %s41
      %s42 = sphi 0, %s39
      %s43 = sphi 0, %s42
      %s59 = sphi 0, %s43
      %s65 = sphi 0, %s67
      %s68 = sphi 0, %s65
      %s69 = sphi 0, %s68
      %s85 = sphi 0, %s69
      %s91 = sphi 0, %s93
      %s94 = sphi 0, %s91
      %s95 = sphi 0, %s94
      %s111 = sphi 0, %s95
      %s117 = sphi 0, %s119
      %s120 = sphi 0, %s117
      %s121 = sphi 0, %s120
      %s137 = sphi 0, %s121
      %s141 = sphi 0, %s141
      %s143 = sphi 0, %s141
      %s144 = sphi 0, %s143
      %s158 = sphi 0, %s144
      %s162 = sphi 0, %s162
      %s164 = sphi 0, %s162
      %s165 = sphi 0, %s164
      %s179 = sphi 0, %s165
      %s183 = sphi 0, %s183
      %s185 = sphi 0, %s183
      %s186 = sphi 0, %s185
      %s200 = sphi 0, %s186
      %s204 = sphi 0, %s204
      %s206 = sphi 0, %s204
      %s207 = sphi 0, %s206
      %s221 = sphi 0, %s207
      %s227 = sphi 0, %s229
      %s230 = sphi 0, %s227
      %s231 = sphi 0, %s230
      %s247 = sphi 0, %s231
      %s253 = sphi 0, %s255
      %s256 = sphi 0, %s253
      %s257 = sphi 0, %s256
      %s273 = sphi 0, %s257
    $region4: #{tpu_custom_call.1} parent=1 // loop_header_branch
      %32 = sbr.rel (%p30) target = $region8
    $region5: #{tpu_custom_call.1} parent=1 // loop_body
      %s34 = ssub.s32 %s29, 1
      %s35 = ssub.s32 %s29, 2
      %s36 = sadd.s32 %s29, 1
      %s37 = ssub.s32 %s29, %s36
      %p38 = scmp.eq.s32.totalorder %s37, 0
      %s40 = sadd.s32 %s39, 1
      %s41 = scalar_select %p38, %s39, %s40
      %p44 = pneg %p38
      %p45 = scmp.eq.s32.totalorder %s29, 2
      %p46 = por %p44, %p45
      %p47 = scmp.ne.s32.totalorder %s39, %s42
      %p48 = scmp.eq.s32.totalorder %s29, 0
      %p49 = por %p47, %p48
      %p50 = scmp.ne.s32.totalorder %s39, %s42
      %p51 = scmp.eq.s32.totalorder %s34, 2
      %p52 = por %p50, %p51
      %p53 = scmp.ne.s32.totalorder %s42, %s43
      %p54 = scmp.eq.s32.totalorder %s34, 0
      %p55 = por %p53, %p54
      %p56 = scmp.ne.s32.totalorder %s42, %s43
      %p57 = scmp.eq.s32.totalorder %s35, 2
      %p58 = por %p56, %p57
      %p60 = scmp.ne.s32.totalorder %s43, %s59
      %p61 = scmp.eq.s32.totalorder %s35, 0
      %p62 = por %p60, %p61
      %s63 = ssub.s32 %s29, %s36
      %p64 = scmp.eq.s32.totalorder %s63, 0
      %s66 = sadd.s32 %s65, 1
      %s67 = scalar_select %p64, %s65, %s66
      %p70 = pneg %p64
      %p71 = scmp.eq.s32.totalorder %s29, 2
      %p72 = por %p70, %p71
      %p73 = scmp.ne.s32.totalorder %s65, %s68
      %p74 = scmp.eq.s32.totalorder %s29, 0
      %p75 = por %p73, %p74
      %p76 = scmp.ne.s32.totalorder %s65, %s68
      %p77 = scmp.eq.s32.totalorder %s34, 2
      %p78 = por %p76, %p77
      %p79 = scmp.ne.s32.totalorder %s68, %s69
      %p80 = scmp.eq.s32.totalorder %s34, 0
      %p81 = por %p79, %p80
      %p82 = scmp.ne.s32.totalorder %s68, %s69
      %p83 = scmp.eq.s32.totalorder %s35, 2
      %p84 = por %p82, %p83
      %p86 = scmp.ne.s32.totalorder %s69, %s85
      %p87 = scmp.eq.s32.totalorder %s35, 0
      %p88 = por %p86, %p87
      %s89 = ssub.s32 %s29, %s36
      %p90 = scmp.eq.s32.totalorder %s89, 0
      %s92 = sadd.s32 %s91, 1
      %s93 = scalar_select %p90, %s91, %s92
      %p96 = pneg %p90
      %p97 = scmp.eq.s32.totalorder %s29, 2
      %p98 = por %p96, %p97
      %p99 = scmp.ne.s32.totalorder %s91, %s94
      %p100 = scmp.eq.s32.totalorder %s29, 0
      %p101 = por %p99, %p100
      %p102 = scmp.ne.s32.totalorder %s91, %s94
      %p103 = scmp.eq.s32.totalorder %s34, 2
      %p104 = por %p102, %p103
      %p105 = scmp.ne.s32.totalorder %s94, %s95
      %p106 = scmp.eq.s32.totalorder %s34, 0
      %p107 = por %p105, %p106
      %p108 = scmp.ne.s32.totalorder %s94, %s95
      %p109 = scmp.eq.s32.totalorder %s35, 2
      %p110 = por %p108, %p109
      %p112 = scmp.ne.s32.totalorder %s95, %s111
      %p113 = scmp.eq.s32.totalorder %s35, 0
      %p114 = por %p112, %p113
      %s115 = ssub.s32 %s29, %s36
      %p116 = scmp.eq.s32.totalorder %s115, 0
      %s118 = sadd.s32 %s117, 1
      %s119 = scalar_select %p116, %s117, %s118
      %p122 = pneg %p116
      %p123 = scmp.eq.s32.totalorder %s29, 2
      %p124 = por %p122, %p123
      %p125 = scmp.ne.s32.totalorder %s117, %s120
      %p126 = scmp.eq.s32.totalorder %s29, 0
      %p127 = por %p125, %p126
      %p128 = scmp.ne.s32.totalorder %s117, %s120
      %p129 = scmp.eq.s32.totalorder %s34, 2
      %p130 = por %p128, %p129
      %p131 = scmp.ne.s32.totalorder %s120, %s121
      %p132 = scmp.eq.s32.totalorder %s34, 0
      %p133 = por %p131, %p132
      %p134 = scmp.ne.s32.totalorder %s120, %s121
      %p135 = scmp.eq.s32.totalorder %s35, 2
      %p136 = por %p134, %p135
      %p138 = scmp.ne.s32.totalorder %s121, %s137
      %p139 = scmp.eq.s32.totalorder %s35, 0
      %p140 = por %p138, %p139
      %s142 = sadd.s32 %s141, 1
      %p145 = scmp.eq.s32.totalorder %s29, 2
      %p146 = scmp.ne.s32.totalorder %s141, %s143
      %p147 = scmp.eq.s32.totalorder %s29, 0
      %p148 = por %p146, %p147
      %p149 = scmp.ne.s32.totalorder %s141, %s143
      %p150 = scmp.eq.s32.totalorder %s34, 2
      %p151 = por %p149, %p150
      %p152 = scmp.ne.s32.totalorder %s143, %s144
      %p153 = scmp.eq.s32.totalorder %s34, 0
      %p154 = por %p152, %p153
      %p155 = scmp.ne.s32.totalorder %s143, %s144
      %p156 = scmp.eq.s32.totalorder %s35, 2
      %p157 = por %p155, %p156
      %p159 = scmp.ne.s32.totalorder %s144, %s158
      %p160 = scmp.eq.s32.totalorder %s35, 0
      %p161 = por %p159, %p160
      %s163 = sadd.s32 %s162, 1
      %p166 = scmp.eq.s32.totalorder %s29, 2
      %p167 = scmp.ne.s32.totalorder %s162, %s164
      %p168 = scmp.eq.s32.totalorder %s29, 0
      %p169 = por %p167, %p168
      %p170 = scmp.ne.s32.totalorder %s162, %s164
      %p171 = scmp.eq.s32.totalorder %s34, 2
      %p172 = por %p170, %p171
      %p173 = scmp.ne.s32.totalorder %s164, %s165
      %p174 = scmp.eq.s32.totalorder %s34, 0
      %p175 = por %p173, %p174
      %p176 = scmp.ne.s32.totalorder %s164, %s165
      %p177 = scmp.eq.s32.totalorder %s35, 2
      %p178 = por %p176, %p177
      %p180 = scmp.ne.s32.totalorder %s165, %s179
      %p181 = scmp.eq.s32.totalorder %s35, 0
      %p182 = por %p180, %p181
      %s184 = sadd.s32 %s183, 1
      %p187 = scmp.eq.s32.totalorder %s29, 2
      %p188 = scmp.ne.s32.totalorder %s183, %s185
      %p189 = scmp.eq.s32.totalorder %s29, 0
      %p190 = por %p188, %p189
      %p191 = scmp.ne.s32.totalorder %s183, %s185
      %p192 = scmp.eq.s32.totalorder %s34, 2
      %p193 = por %p191, %p192
      %p194 = scmp.ne.s32.totalorder %s185, %s186
      %p195 = scmp.eq.s32.totalorder %s34, 0
      %p196 = por %p194, %p195
      %p197 = scmp.ne.s32.totalorder %s185, %s186
      %p198 = scmp.eq.s32.totalorder %s35, 2
      %p199 = por %p197, %p198
      %p201 = scmp.ne.s32.totalorder %s186, %s200
      %p202 = scmp.eq.s32.totalorder %s35, 0
      %p203 = por %p201, %p202
      %s205 = sadd.s32 %s204, 1
      %p208 = scmp.eq.s32.totalorder %s29, 2
      %p209 = scmp.ne.s32.totalorder %s204, %s206
      %p210 = scmp.eq.s32.totalorder %s29, 0
      %p211 = por %p209, %p210
      %p212 = scmp.ne.s32.totalorder %s204, %s206
      %p213 = scmp.eq.s32.totalorder %s34, 2
      %p214 = por %p212, %p213
      %p215 = scmp.ne.s32.totalorder %s206, %s207
      %p216 = scmp.eq.s32.totalorder %s34, 0
      %p217 = por %p215, %p216
      %p218 = scmp.ne.s32.totalorder %s206, %s207
      %p219 = scmp.eq.s32.totalorder %s35, 2
      %p220 = por %p218, %p219
      %p222 = scmp.ne.s32.totalorder %s207, %s221
      %p223 = scmp.eq.s32.totalorder %s35, 0
      %p224 = por %p222, %p223
      %s225 = ssub.s32 %s29, %s36
      %p226 = scmp.eq.s32.totalorder %s225, 0
      %s228 = sadd.s32 %s227, 1
      %s229 = scalar_select %p226, %s227, %s228
      %p232 = pneg %p226
      %p233 = scmp.eq.s32.totalorder %s29, 2
      %p234 = por %p232, %p233
      %p235 = scmp.ne.s32.totalorder %s227, %s230
      %p236 = scmp.eq.s32.totalorder %s29, 0
      %p237 = por %p235, %p236
      %p238 = scmp.ne.s32.totalorder %s227, %s230
      %p239 = scmp.eq.s32.totalorder %s34, 2
      %p240 = por %p238, %p239
      %p241 = scmp.ne.s32.totalorder %s230, %s231
      %p242 = scmp.eq.s32.totalorder %s34, 0
      %p243 = por %p241, %p242
      %p244 = scmp.ne.s32.totalorder %s230, %s231
      %p245 = scmp.eq.s32.totalorder %s35, 2
      %p246 = por %p244, %p245
      %p248 = scmp.ne.s32.totalorder %s231, %s247
      %p249 = scmp.eq.s32.totalorder %s35, 0
      %p250 = por %p248, %p249
      %s251 = ssub.s32 %s29, %s36
      %p252 = scmp.eq.s32.totalorder %s251, 0
      %s254 = sadd.s32 %s253, 1
      %s255 = scalar_select %p252, %s253, %s254
      %p258 = pneg %p252
      %p259 = scmp.eq.s32.totalorder %s29, 2
      %p260 = por %p258, %p259
      %p261 = scmp.ne.s32.totalorder %s253, %s256
      %p262 = scmp.eq.s32.totalorder %s29, 0
      %p263 = por %p261, %p262
      %p264 = scmp.ne.s32.totalorder %s253, %s256
      %p265 = scmp.eq.s32.totalorder %s34, 2
      %p266 = por %p264, %p265
      %p267 = scmp.ne.s32.totalorder %s256, %s257
      %p268 = scmp.eq.s32.totalorder %s34, 0
      %p269 = por %p267, %p268
      %p270 = scmp.ne.s32.totalorder %s256, %s257
      %p271 = scmp.eq.s32.totalorder %s35, 2
      %p272 = por %p270, %p271
      %p274 = scmp.ne.s32.totalorder %s257, %s273
      %p275 = scmp.eq.s32.totalorder %s35, 0
      %p276 = por %p274, %p275
      %p277 = scmp.le.s32.totalorder 1, %s29
      %p278 = scmp.lt.s32.totalorder %s29, 4
      %p279 = pnand %p277, %p278
      %p280 = pneg %p279
      // Predicated region
      $region9: #{tpu_custom_call.1} parent=5 // pred_check
        _
      $region10: #{tpu_custom_call.1} parent=5 // pred_check_branch
        %282 = sbr.rel (%p279) target = $region12
      $region11: #{tpu_custom_call.1} parent=5 // pred_region
        %s283 = ssub.s32 %s29, 1
        // Predicated region
        $region13: #{tpu_custom_call.1} parent=11 // pred_check
          %p284 = pneg %p154
        $region14: #{tpu_custom_call.1} parent=11 // pred_check_branch
          %286 = sbr.rel (%p284) target = $region16
        $region15: #{tpu_custom_call.1} parent=11 // pred_region
          _
        $region16: #{tpu_custom_call.1} parent=11 // pred_fallthru
          _
        // Predicated region
        $region17: #{tpu_custom_call.1} parent=11 // pred_check
          %p287 = pneg %p175
        $region18: #{tpu_custom_call.1} parent=11 // pred_check_branch
          %289 = sbr.rel (%p287) target = $region20
        $region19: #{tpu_custom_call.1} parent=11 // pred_region
          _
        $region20: #{tpu_custom_call.1} parent=11 // pred_fallthru
          _
        // Predicated region
        $region21: #{tpu_custom_call.1} parent=11 // pred_check
          %p290 = pneg %p196
        $region22: #{tpu_custom_call.1} parent=11 // pred_check_branch
          %292 = sbr.rel (%p290) target = $region24
        $region23: #{tpu_custom_call.1} parent=11 // pred_region
          %s294 = ssub.s32 2048, 2048
          %295 = vsyncadd [#allocation9], %s294
          %s296 = sshll.u32 [#allocation8], 4
          %s297 = int_to_ptr.vmem [resolvable:$true] %s296
          %302 = dma.hbm_to_vmem [thread:$0]  %s6, 2048, %s297, [#allocation9], 128, 128, 8
        $region24: #{tpu_custom_call.1} parent=11 // pred_fallthru
          _
        // Predicated region
        $region25: #{tpu_custom_call.1} parent=11 // pred_check
          %p303 = pneg %p217
        $region26: #{tpu_custom_call.1} parent=11 // pred_check_branch
          %305 = sbr.rel (%p303) target = $region28
        $region27: #{tpu_custom_call.1} parent=11 // pred_region
          _
        $region28: #{tpu_custom_call.1} parent=11 // pred_fallthru
          _
      $region12: #{tpu_custom_call.1} parent=5 // pred_fallthru
        _
      %p306 = scmp.lt.s32.totalorder %s29, 3
      // Predicated region
      $region29: #{tpu_custom_call.1} parent=5 // pred_check
        %p307 = pneg %p306
      $region30: #{tpu_custom_call.1} parent=5 // pred_check_branch
        %309 = sbr.rel (%p307) target = $region32
      $region31: #{tpu_custom_call.1} parent=5 // pred_region
        // Predicated region
        $region33: #{tpu_custom_call.1} parent=31 // pred_check
          %p310 = pneg %p49
        $region34: #{tpu_custom_call.1} parent=31 // pred_check_branch
          %312 = sbr.rel (%p310) target = $region36
        $region35: #{tpu_custom_call.1} parent=31 // pred_region
          %s313 = sand.u32 %s39, 1
          %s314 = scalar_lea.sflag [#allocation3], %s313
          %s315 = sand.u32 %s39, 1
          %s316 = smul.addr %s315, 512
          %s317 = scalar_lea.vmem [#allocation2], %s316
          %s318 = smul.u32 8, %s29
          %s320 = ssub.s32 8192, 8192
          %321 = vsyncadd %s314, %s320
          %s322 = smul.addr %s318, 8
          %s323 = smul.addr %s322, 128
          %s324 = scalar_lea.hbm %s0, %s323
          %s325 = sshll.u32 %s317, 4
          %s326 = int_to_ptr.vmem [resolvable:$true] %s325
          %331 = dma.hbm_to_vmem [thread:$0]  %s324, 8192, %s326, %s314, 128, 128, 8
        $region36: #{tpu_custom_call.1} parent=31 // pred_fallthru
          _
        // Predicated region
        $region37: #{tpu_custom_call.1} parent=31 // pred_check
          %p332 = pneg %p75
        $region38: #{tpu_custom_call.1} parent=31 // pred_check_branch
          %334 = sbr.rel (%p332) target = $region40
        $region39: #{tpu_custom_call.1} parent=31 // pred_region
          %s335 = sand.u32 %s29, 1
          %s336 = scalar_lea.sflag [#allocation6], %s335
          %s337 = sand.u32 %s65, 1
          %s338 = smul.addr %s337, 8
          %s339 = scalar_lea.vmem [#allocation5], %s338
          %s341 = ssub.s32 128, 128
          %342 = vsyncadd %s336, %s341
          %s343 = smul.addr %s29, 128
          %s344 = scalar_lea.hbm %s1, %s343
          %s346 = sshll.u32 %s339, 4
          %s347 = int_to_ptr.vmem [resolvable:$true] %s346
          %349 = dma.hbm_to_vmem [thread:$0]  %s344, 128, %s347, %s336
        $region40: #{tpu_custom_call.1} parent=31 // pred_fallthru
          _
        // Predicated region
        $region41: #{tpu_custom_call.1} parent=31 // pred_check
          %p350 = pneg %p101
        $region42: #{tpu_custom_call.1} parent=31 // pred_check_branch
          %352 = sbr.rel (%p350) target = $region44
        $region43: #{tpu_custom_call.1} parent=31 // pred_region
          %s353 = sand.u32 %s29, 1
          %s354 = scalar_lea.sflag [#allocation6], %s353
          %s355 = sand.u32 %s91, 1
          %s356 = smul.addr %s355, 8
          %s357 = scalar_lea.vmem [#allocation7], %s356
          %s359 = ssub.s32 128, 128
          %360 = vsyncadd %s354, %s359
          %s361 = smul.addr %s29, 128
          %s362 = scalar_lea.hbm %s2, %s361
          %s364 = sshll.u32 %s357, 4
          %s365 = int_to_ptr.vmem [resolvable:$true] %s364
          %367 = dma.hbm_to_vmem [thread:$0]  %s362, 128, %s365, %s354
        $region44: #{tpu_custom_call.1} parent=31 // pred_fallthru
          _
        // Predicated region
        $region45: #{tpu_custom_call.1} parent=31 // pred_check
          %p368 = pneg %p127
        $region46: #{tpu_custom_call.1} parent=31 // pred_check_branch
          %370 = sbr.rel (%p368) target = $region48
        $region47: #{tpu_custom_call.1} parent=31 // pred_region
          %p371 = scmp.lt.s32.totalorder %s29, 2
          %s372 = scalar_select %p371, %s29, 2
          %s373 = smul.addr %s372, 8
          %s374 = scalar_lea.vmem %s3, %s373
        $region48: #{tpu_custom_call.1} parent=31 // pred_fallthru
          _
      $region32: #{tpu_custom_call.1} parent=5 // pred_fallthru
        _
      %p375 = scmp.le.s32.totalorder 1, %s29
      %p376 = scmp.lt.s32.totalorder %s29, 4
      %p377 = pnand %p375, %p376
      %p378 = pneg %p377
      // Predicated region
      $region49: #{tpu_custom_call.1} parent=5 // pred_check
        _
      $region50: #{tpu_custom_call.1} parent=5 // pred_check_branch
        %380 = sbr.rel (%p377) target = $region52
      $region51: #{tpu_custom_call.1} parent=5 // pred_region
        %s381 = ssub.s32 %s29, 1
        %s382 = sand.u32 %s42, 1
        %s383 = scalar_lea.sflag [#allocation3], %s382
        %s384 = sand.u32 %s42, 1
        %s385 = smul.addr %s384, 512
        %s386 = scalar_lea.vmem [#allocation2], %s385
        // Predicated region
        $region53: #{tpu_custom_call.1} parent=51 // pred_check
          %p387 = pneg %p55
        $region54: #{tpu_custom_call.1} parent=51 // pred_check_branch
          %389 = sbr.rel (%p387) target = $region56
        $region55: #{tpu_custom_call.1} parent=51 // pred_region
          %390 = dma.done %s383, 8192
        $region56: #{tpu_custom_call.1} parent=51 // pred_fallthru
          _
        %s391 = sand.u32 %s34, 1
        %s392 = scalar_lea.sflag [#allocation6], %s391
        %s393 = sand.u32 %s68, 1
        %s394 = smul.addr %s393, 8
        %s395 = scalar_lea.vmem [#allocation5], %s394
        // Predicated region
        $region57: #{tpu_custom_call.1} parent=51 // pred_check
          %p396 = pneg %p81
        $region58: #{tpu_custom_call.1} parent=51 // pred_check_branch
          %398 = sbr.rel (%p396) target = $region60
        $region59: #{tpu_custom_call.1} parent=51 // pred_region
          %399 = dma.done %s392, 128
        $region60: #{tpu_custom_call.1} parent=51 // pred_fallthru
          _
        %s400 = sand.u32 %s34, 1
        %s401 = scalar_lea.sflag [#allocation6], %s400
        %s402 = sand.u32 %s94, 1
        %s403 = smul.addr %s402, 8
        %s404 = scalar_lea.vmem [#allocation7], %s403
        // Predicated region
        $region61: #{tpu_custom_call.1} parent=51 // pred_check
          %p405 = pneg %p107
        $region62: #{tpu_custom_call.1} parent=51 // pred_check_branch
          %407 = sbr.rel (%p405) target = $region64
        $region63: #{tpu_custom_call.1} parent=51 // pred_region
          %408 = dma.done %s401, 128
        $region64: #{tpu_custom_call.1} parent=51 // pred_fallthru
          _
        // Predicated region
        $region65: #{tpu_custom_call.1} parent=51 // pred_check
          %p409 = pneg %p196
        $region66: #{tpu_custom_call.1} parent=51 // pred_check_branch
          %411 = sbr.rel (%p409) target = $region68
        $region67: #{tpu_custom_call.1} parent=51 // pred_region
          %412 = dma.done [#allocation9], 2048
        $region68: #{tpu_custom_call.1} parent=51 // pred_fallthru
          _
        %s413 = sand.u32 %s42, 1
        %s414 = scalar_lea.sflag [#allocation3], %s413
        %s415 = sand.u32 %s42, 1
        %s416 = smul.addr %s415, 512
        %s417 = scalar_lea.vmem [#allocation2], %s416
        %p418 = pneg %p55
        %p419 = pneg %p52
        %s420 = sand.u32 %s34, 1
        %s421 = scalar_lea.sflag [#allocation6], %s420
        %s422 = sand.u32 %s68, 1
        %s423 = smul.addr %s422, 8
        %s424 = scalar_lea.vmem [#allocation5], %s423
        %p425 = pneg %p81
        %p426 = pneg %p78
        %s427 = sand.u32 %s34, 1
        %s428 = scalar_lea.sflag [#allocation6], %s427
        %s429 = sand.u32 %s94, 1
        %s430 = smul.addr %s429, 8
        %s431 = scalar_lea.vmem [#allocation7], %s430
        %p432 = pneg %p107
        %p433 = pneg %p104
        %p434 = scmp.lt.s32.totalorder %s34, 2
        %s435 = scalar_select %p434, %s34, 2
        %s436 = smul.addr %s435, 8
        %s437 = scalar_lea.vmem %s3, %s436
        %p438 = pneg %p133
        %p439 = pneg %p130
        %p440 = pneg %p154
        %p441 = pneg %p151
        %p442 = pneg %p175
        %p443 = pneg %p172
        %p444 = pneg %p196
        %p445 = pneg %p193
        %p446 = pneg %p217
        %p447 = pneg %p214
        %p448 = pneg %p243
        %p449 = pneg %p240
        %s450 = sand.u32 %s230, 1
        %s451 = scalar_lea.sflag [#allocation4], %s450
        %s452 = sand.u32 %s230, 1
        %s453 = smul.addr %s452, 8
        %s454 = scalar_lea.vmem [#allocation10], %s453
        %p455 = pneg %p269
        %p456 = pneg %p266
        %s457 = sand.u32 %s256, 1
        %s458 = scalar_lea.sflag [#allocation12], %s457
        %s459 = sand.u32 %s256, 1
        %s460 = smul.addr %s459, 8
        %s461 = scalar_lea.vmem [#allocation11], %s460
        %s462 = smul.u32 8, %s34
        %p463 = scmp.lt.s32.totalorder %s34, 2
        %s464 = scalar_select %p463, %s34, 2
        %s465 = smul.addr %s464, 8
        %s466 = scalar_lea.vmem %s3, %s465
        %v467 = vld [vmem:[%s395] sm:$0xff]
        %v468 = vld [vmem:[%s4] sm:$0xff]
        %v469 = vld [vmem:[%s4 + $0x8] sm:$0xff]
        %v470 = vld [vmem:[%s4 + $0x10] sm:$0xff]
        %v471 = vld [vmem:[%s4 + $0x18] sm:$0xff]
        %vm472 = vcmask 261120
        %v474 = vsel %vm472, %v467, 0
        %476 = vmatprep.subr.mxu0 0.0
        %477 = vmatpush1.msra.mxu0 0.0
        %478 = vmatprep.subr.mxu0 0.0
        %479 = vmatpush1.msra.mxu0 0.0
        %480 = vmatprep.subr.mxu0 0.0
        %481 = vmatpush1.msra.mxu0 0.0
        %482 = vmatprep.subr.mxu0 0.0
        %483 = vmatpush1.msra.mxu0 0.0
        %484 = vmatprep.subr.mxu0 0.0
        %485 = vmatpush1.msra.mxu0 0.0
        %486 = vmatprep.subr.mxu0 0.0
        %487 = vmatpush1.msra.mxu0 0.0
        %488 = vmatprep.subr.mxu0 0.0
        %489 = vmatpush1.msra.mxu0 0.0
        %490 = vmatprep.subr.mxu0 0.0
        %491 = vmatpush1.msra.mxu0 0.0
        %492 = vmatprep.subr.mxu0 0.0
        %493 = vmatpush1.msra.mxu0 0.0
        %494 = vmatprep.subr.mxu0 0.0
        %495 = vmatpush1.msra.mxu0 0.0
        %496 = vmatprep.subr.mxu0 0.0
        %497 = vmatpush1.msra.mxu0 0.0
        %498 = vmatprep.subr.mxu0 0.0
        %499 = vmatpush1.msra.mxu0 0.0
        %500 = vmatprep.subr.mxu0 0.0
        %501 = vmatpush1.msra.mxu0 %v471
        %502 = vmatprep.subr.mxu0 0.0
        %503 = vmatpush1.msra.mxu0 %v470
        %504 = vmatprep.subr.mxu0 0.0
        %505 = vmatpush1.msra.mxu0 %v469
        %506 = vmatprep.subr.mxu0 0.0
        %507 = vmatpush1.msra.mxu0 %v468
        %508 = vmatprep.subr.mxu0 0.0
        %509 = vmatpush2.msra.mxu0 0.0
        %510 = vmatprep.subr.mxu0 0.0
        %511 = vmatpush2.msra.mxu0 0.0
        %512 = vmatprep.subr.mxu0 0.0
        %513 = vmatpush2.msra.mxu0 0.0
        %514 = vmatprep.subr.mxu0 0.0
        %515 = vmatpush2.msra.mxu0 0.0
        %516 = vmatprep.subr.mxu0 0.0
        %517 = vmatpush2.msra.mxu0 0.0
        %518 = vmatprep.subr.mxu0 0.0
        %519 = vmatpush2.msra.mxu0 0.0
        %520 = vmatprep.subr.mxu0 0.0
        %521 = vmatpush2.msra.mxu0 0.0
        %522 = vmatprep.subr.mxu0 0.0
        %523 = vmatpush2.msra.mxu0 0.0
        %524 = vmatprep.subr.mxu0 0.0
        %525 = vmatpush2.msra.mxu0 0.0
        %526 = vmatprep.subr.mxu0 0.0
        %527 = vmatpush2.msra.mxu0 0.0
        %528 = vmatprep.subr.mxu0 0.0
        %529 = vmatpush2.msra.mxu0 0.0
        %530 = vmatprep.subr.mxu0 0.0
        %531 = vmatpush2.msra.mxu0 0.0
        %532 = vmatprep.subr.mxu0 0.0
        %533 = vmatpush2.msra.mxu0 0.0
        %534 = vmatprep.subr.mxu0 0.0
        %535 = vmatpush2.msra.mxu0 0.0
        %536 = vmatprep.subr.mxu0 0.0
        %537 = vmatpush2.msra.mxu0 0.0
        %538 = vmatprep.subr.mxu0 0.0
        %539 = vmatpush2.msra.mxu0 0.0
        %540 = vmatprep.mubr.f32.mxu0 0.0
        %541 = vmatmul.mubr.f32.gmra.mxu0 %v474
        %v542 = vpop.f32.mrf.mxu0
        %v543 = vadd.f32 0.0, %v542
        %v544 = vpop.f32.mrf.mxu0
        %545 = vdwg.mxu0
        %v546 = vld [vmem:[%s5] sm:$0x1]
        %v548 = vlaneseq
        %v549 = vshrl.u32 %v548, 7
        %v550 = vsub.s32 0, %v549
        %v551 = vrot.slane %v546, %v550
        %v553 = vmul.f32 %v467, %v551
        %v554 = vsel %vm472, %v553, 0.0
        %555 = vadd.xlane.f32.xlu0 %v554
        %v556 = vpop.xlane.xlu0 %555
        %v557 = vld [vmem:[%s386] sm:$0xff]
        %v558 = vld [vmem:[%s386 + $0x8] sm:$0xff]
        %v559 = vld [vmem:[%s386 + $0x10] sm:$0xff]
        %v560 = vld [vmem:[%s386 + $0x18] sm:$0xff]
        %v561 = vld [vmem:[%s386 + $0x20] sm:$0xff]
        %v562 = vld [vmem:[%s386 + $0x28] sm:$0xff]
        %v563 = vld [vmem:[%s386 + $0x30] sm:$0xff]
        %v564 = vld [vmem:[%s386 + $0x38] sm:$0xff]
        %v565 = vld [vmem:[%s386 + $0x40] sm:$0xff]
        %v566 = vld [vmem:[%s386 + $0x48] sm:$0xff]
        %v567 = vld [vmem:[%s386 + $0x50] sm:$0xff]
        %v568 = vld [vmem:[%s386 + $0x58] sm:$0xff]
        %v569 = vld [vmem:[%s386 + $0x60] sm:$0xff]
        %v570 = vld [vmem:[%s386 + $0x68] sm:$0xff]
        %v571 = vld [vmem:[%s386 + $0x70] sm:$0xff]
        %v572 = vld [vmem:[%s386 + $0x78] sm:$0xff]
        %v573 = vld [vmem:[%s386 + $0x80] sm:$0xff]
        %v574 = vld [vmem:[%s386 + $0x88] sm:$0xff]
        %v575 = vld [vmem:[%s386 + $0x90] sm:$0xff]
        %v576 = vld [vmem:[%s386 + $0x98] sm:$0xff]
        %v577 = vld [vmem:[%s386 + $0xa0] sm:$0xff]
        %v578 = vld [vmem:[%s386 + $0xa8] sm:$0xff]
        %v579 = vld [vmem:[%s386 + $0xb0] sm:$0xff]
        %v580 = vld [vmem:[%s386 + $0xb8] sm:$0xff]
        %v581 = vld [vmem:[%s386 + $0xc0] sm:$0xff]
        %v582 = vld [vmem:[%s386 + $0xc8] sm:$0xff]
        %v583 = vld [vmem:[%s386 + $0xd0] sm:$0xff]
        %v584 = vld [vmem:[%s386 + $0xd8] sm:$0xff]
        %v585 = vld [vmem:[%s386 + $0xe0] sm:$0xff]
        %v586 = vld [vmem:[%s386 + $0xe8] sm:$0xff]
        %v587 = vld [vmem:[%s386 + $0xf0] sm:$0xff]
        %v588 = vld [vmem:[%s386 + $0xf8] sm:$0xff]
        %v589 = vld [vmem:[%s386 + $0x100] sm:$0xff]
        %v590 = vld [vmem:[%s386 + $0x108] sm:$0xff]
        %v591 = vld [vmem:[%s386 + $0x110] sm:$0xff]
        %v592 = vld [vmem:[%s386 + $0x118] sm:$0xff]
        %v593 = vld [vmem:[%s386 + $0x120] sm:$0xff]
        %v594 = vld [vmem:[%s386 + $0x128] sm:$0xff]
        %v595 = vld [vmem:[%s386 + $0x130] sm:$0xff]
        %v596 = vld [vmem:[%s386 + $0x138] sm:$0xff]
        %v597 = vld [vmem:[%s386 + $0x140] sm:$0xff]
        %v598 = vld [vmem:[%s386 + $0x148] sm:$0xff]
        %v599 = vld [vmem:[%s386 + $0x150] sm:$0xff]
        %v600 = vld [vmem:[%s386 + $0x158] sm:$0xff]
        %v601 = vld [vmem:[%s386 + $0x160] sm:$0xff]
        %v602 = vld [vmem:[%s386 + $0x168] sm:$0xff]
        %v603 = vld [vmem:[%s386 + $0x170] sm:$0xff]
        %v604 = vld [vmem:[%s386 + $0x178] sm:$0xff]
        %v605 = vld [vmem:[%s386 + $0x180] sm:$0xff]
        %v606 = vld [vmem:[%s386 + $0x188] sm:$0xff]
        %v607 = vld [vmem:[%s386 + $0x190] sm:$0xff]
        %v608 = vld [vmem:[%s386 + $0x198] sm:$0xff]
        %v609 = vld [vmem:[%s386 + $0x1a0] sm:$0xff]
        %v610 = vld [vmem:[%s386 + $0x1a8] sm:$0xff]
        %v611 = vld [vmem:[%s386 + $0x1b0] sm:$0xff]
        %v612 = vld [vmem:[%s386 + $0x1b8] sm:$0xff]
        %v613 = vld [vmem:[%s386 + $0x1c0] sm:$0xff]
        %v614 = vld [vmem:[%s386 + $0x1c8] sm:$0xff]
        %v615 = vld [vmem:[%s386 + $0x1d0] sm:$0xff]
        %v616 = vld [vmem:[%s386 + $0x1d8] sm:$0xff]
        %v617 = vld [vmem:[%s386 + $0x1e0] sm:$0xff]
        %v618 = vld [vmem:[%s386 + $0x1e8] sm:$0xff]
        %v619 = vld [vmem:[%s386 + $0x1f0] sm:$0xff]
        %v620 = vld [vmem:[%s386 + $0x1f8] sm:$0xff]
        %v621 = vlaneseq
        %v622 = vshrl.u32 %v621, 7
        %v623 = vsub.s32 0, %v622
        %v624 = vrot.slane %v543, %v623
        %626 = vbcast.lane.b32.xlu0 %v624, 256
        %v627 = vpop.permute.xlu0 %626
        %s629 = sor.u32 256, 8
        %630 = vbcast.lane.b32.xlu0 %v624, %s629
        %v631 = vpop.permute.xlu0 %630
        %s633 = sor.u32 256, 16
        %634 = vbcast.lane.b32.xlu0 %v624, %s633
        %v635 = vpop.permute.xlu0 %634
        %s637 = sor.u32 256, 24
        %638 = vbcast.lane.b32.xlu0 %v624, %s637
        %v639 = vpop.permute.xlu0 %638
        %s641 = sor.u32 256, 32
        %642 = vbcast.lane.b32.xlu0 %v624, %s641
        %v643 = vpop.permute.xlu0 %642
        %s645 = sor.u32 256, 40
        %646 = vbcast.lane.b32.xlu0 %v624, %s645
        %v647 = vpop.permute.xlu0 %646
        %s649 = sor.u32 256, 48
        %650 = vbcast.lane.b32.xlu0 %v624, %s649
        %v651 = vpop.permute.xlu0 %650
        %s653 = sor.u32 256, 56
        %654 = vbcast.lane.b32.xlu0 %v624, %s653
        %v655 = vpop.permute.xlu0 %654
        %v656 = vlaneseq
        %v657 = vshrl.u32 %v656, 7
        %v658 = vsub.s32 1, %v657
        %v659 = vrot.slane %v543, %v658
        %661 = vbcast.lane.b32.xlu0 %v659, 256
        %v662 = vpop.permute.xlu0 %661
        %s664 = sor.u32 256, 8
        %665 = vbcast.lane.b32.xlu0 %v659, %s664
        %v666 = vpop.permute.xlu0 %665
        %s668 = sor.u32 256, 16
        %669 = vbcast.lane.b32.xlu0 %v659, %s668
        %v670 = vpop.permute.xlu0 %669
        %s672 = sor.u32 256, 24
        %673 = vbcast.lane.b32.xlu0 %v659, %s672
        %v674 = vpop.permute.xlu0 %673
        %s676 = sor.u32 256, 32
        %677 = vbcast.lane.b32.xlu0 %v659, %s676
        %v678 = vpop.permute.xlu0 %677
        %s680 = sor.u32 256, 40
        %681 = vbcast.lane.b32.xlu0 %v659, %s680
        %v682 = vpop.permute.xlu0 %681
        %s684 = sor.u32 256, 48
        %685 = vbcast.lane.b32.xlu0 %v659, %s684
        %v686 = vpop.permute.xlu0 %685
        %s688 = sor.u32 256, 56
        %689 = vbcast.lane.b32.xlu0 %v659, %s688
        %v690 = vpop.permute.xlu0 %689
        %v691 = vlaneseq
        %v692 = vshrl.u32 %v691, 7
        %v693 = vsub.s32 2, %v692
        %v694 = vrot.slane %v543, %v693
        %696 = vbcast.lane.b32.xlu0 %v694, 256
        %v697 = vpop.permute.xlu0 %696
        %s699 = sor.u32 256, 8
        %700 = vbcast.lane.b32.xlu0 %v694, %s699
        %v701 = vpop.permute.xlu0 %700
        %s703 = sor.u32 256, 16
        %704 = vbcast.lane.b32.xlu0 %v694, %s703
        %v705 = vpop.permute.xlu0 %704
        %s707 = sor.u32 256, 24
        %708 = vbcast.lane.b32.xlu0 %v694, %s707
        %v709 = vpop.permute.xlu0 %708
        %s711 = sor.u32 256, 32
        %712 = vbcast.lane.b32.xlu0 %v694, %s711
        %v713 = vpop.permute.xlu0 %712
        %s715 = sor.u32 256, 40
        %716 = vbcast.lane.b32.xlu0 %v694, %s715
        %v717 = vpop.permute.xlu0 %716
        %s719 = sor.u32 256, 48
        %720 = vbcast.lane.b32.xlu0 %v694, %s719
        %v721 = vpop.permute.xlu0 %720
        %s723 = sor.u32 256, 56
        %724 = vbcast.lane.b32.xlu0 %v694, %s723
        %v725 = vpop.permute.xlu0 %724
        %v726 = vlaneseq
        %v727 = vshrl.u32 %v726, 7
        %v728 = vsub.s32 3, %v727
        %v729 = vrot.slane %v543, %v728
        %731 = vbcast.lane.b32.xlu0 %v729, 256
        %v732 = vpop.permute.xlu0 %731
        %s734 = sor.u32 256, 8
        %735 = vbcast.lane.b32.xlu0 %v729, %s734
        %v736 = vpop.permute.xlu0 %735
        %s738 = sor.u32 256, 16
        %739 = vbcast.lane.b32.xlu0 %v729, %s738
        %v740 = vpop.permute.xlu0 %739
        %s742 = sor.u32 256, 24
        %743 = vbcast.lane.b32.xlu0 %v729, %s742
        %v744 = vpop.permute.xlu0 %743
        %s746 = sor.u32 256, 32
        %747 = vbcast.lane.b32.xlu0 %v729, %s746
        %v748 = vpop.permute.xlu0 %747
        %s750 = sor.u32 256, 40
        %751 = vbcast.lane.b32.xlu0 %v729, %s750
        %v752 = vpop.permute.xlu0 %751
        %s754 = sor.u32 256, 48
        %755 = vbcast.lane.b32.xlu0 %v729, %s754
        %v756 = vpop.permute.xlu0 %755
        %s758 = sor.u32 256, 56
        %759 = vbcast.lane.b32.xlu0 %v729, %s758
        %v760 = vpop.permute.xlu0 %759
        %v761 = vlaneseq
        %v762 = vshrl.u32 %v761, 7
        %v763 = vsub.s32 4, %v762
        %v764 = vrot.slane %v543, %v763
        %766 = vbcast.lane.b32.xlu0 %v764, 256
        %v767 = vpop.permute.xlu0 %766
        %s769 = sor.u32 256, 8
        %770 = vbcast.lane.b32.xlu0 %v764, %s769
        %v771 = vpop.permute.xlu0 %770
        %s773 = sor.u32 256, 16
        %774 = vbcast.lane.b32.xlu0 %v764, %s773
        %v775 = vpop.permute.xlu0 %774
        %s777 = sor.u32 256, 24
        %778 = vbcast.lane.b32.xlu0 %v764, %s777
        %v779 = vpop.permute.xlu0 %778
        %s781 = sor.u32 256, 32
        %782 = vbcast.lane.b32.xlu0 %v764, %s781
        %v783 = vpop.permute.xlu0 %782
        %s785 = sor.u32 256, 40
        %786 = vbcast.lane.b32.xlu0 %v764, %s785
        %v787 = vpop.permute.xlu0 %786
        %s789 = sor.u32 256, 48
        %790 = vbcast.lane.b32.xlu0 %v764, %s789
        %v791 = vpop.permute.xlu0 %790
        %s793 = sor.u32 256, 56
        %794 = vbcast.lane.b32.xlu0 %v764, %s793
        %v795 = vpop.permute.xlu0 %794
        %v796 = vlaneseq
        %v797 = vshrl.u32 %v796, 7
        %v798 = vsub.s32 5, %v797
        %v799 = vrot.slane %v543, %v798
        %801 = vbcast.lane.b32.xlu0 %v799, 256
        %v802 = vpop.permute.xlu0 %801
        %s804 = sor.u32 256, 8
        %805 = vbcast.lane.b32.xlu0 %v799, %s804
        %v806 = vpop.permute.xlu0 %805
        %s808 = sor.u32 256, 16
        %809 = vbcast.lane.b32.xlu0 %v799, %s808
        %v810 = vpop.permute.xlu0 %809
        %s812 = sor.u32 256, 24
        %813 = vbcast.lane.b32.xlu0 %v799, %s812
        %v814 = vpop.permute.xlu0 %813
        %s816 = sor.u32 256, 32
        %817 = vbcast.lane.b32.xlu0 %v799, %s816
        %v818 = vpop.permute.xlu0 %817
        %s820 = sor.u32 256, 40
        %821 = vbcast.lane.b32.xlu0 %v799, %s820
        %v822 = vpop.permute.xlu0 %821
        %s824 = sor.u32 256, 48
        %825 = vbcast.lane.b32.xlu0 %v799, %s824
        %v826 = vpop.permute.xlu0 %825
        %s828 = sor.u32 256, 56
        %829 = vbcast.lane.b32.xlu0 %v799, %s828
        %v830 = vpop.permute.xlu0 %829
        %v831 = vlaneseq
        %v832 = vshrl.u32 %v831, 7
        %v833 = vsub.s32 6, %v832
        %v834 = vrot.slane %v543, %v833
        %836 = vbcast.lane.b32.xlu0 %v834, 256
        %v837 = vpop.permute.xlu0 %836
        %s839 = sor.u32 256, 8
        %840 = vbcast.lane.b32.xlu0 %v834, %s839
        %v841 = vpop.permute.xlu0 %840
        %s843 = sor.u32 256, 16
        %844 = vbcast.lane.b32.xlu0 %v834, %s843
        %v845 = vpop.permute.xlu0 %844
        %s847 = sor.u32 256, 24
        %848 = vbcast.lane.b32.xlu0 %v834, %s847
        %v849 = vpop.permute.xlu0 %848
        %s851 = sor.u32 256, 32
        %852 = vbcast.lane.b32.xlu0 %v834, %s851
        %v853 = vpop.permute.xlu0 %852
        %s855 = sor.u32 256, 40
        %856 = vbcast.lane.b32.xlu0 %v834, %s855
        %v857 = vpop.permute.xlu0 %856
        %s859 = sor.u32 256, 48
        %860 = vbcast.lane.b32.xlu0 %v834, %s859
        %v861 = vpop.permute.xlu0 %860
        %s863 = sor.u32 256, 56
        %864 = vbcast.lane.b32.xlu0 %v834, %s863
        %v865 = vpop.permute.xlu0 %864
        %v866 = vlaneseq
        %v867 = vshrl.u32 %v866, 7
        %v868 = vsub.s32 7, %v867
        %v869 = vrot.slane %v543, %v868
        %871 = vbcast.lane.b32.xlu0 %v869, 256
        %v872 = vpop.permute.xlu0 %871
        %s874 = sor.u32 256, 8
        %875 = vbcast.lane.b32.xlu0 %v869, %s874
        %v876 = vpop.permute.xlu0 %875
        %s878 = sor.u32 256, 16
        %879 = vbcast.lane.b32.xlu0 %v869, %s878
        %v880 = vpop.permute.xlu0 %879
        %s882 = sor.u32 256, 24
        %883 = vbcast.lane.b32.xlu0 %v869, %s882
        %v884 = vpop.permute.xlu0 %883
        %s886 = sor.u32 256, 32
        %887 = vbcast.lane.b32.xlu0 %v869, %s886
        %v888 = vpop.permute.xlu0 %887
        %s890 = sor.u32 256, 40
        %891 = vbcast.lane.b32.xlu0 %v869, %s890
        %v892 = vpop.permute.xlu0 %891
        %s894 = sor.u32 256, 48
        %895 = vbcast.lane.b32.xlu0 %v869, %s894
        %v896 = vpop.permute.xlu0 %895
        %s898 = sor.u32 256, 56
        %899 = vbcast.lane.b32.xlu0 %v869, %s898
        %v900 = vpop.permute.xlu0 %899
        %v901 = vmul.f32 %v557, %v627
        %v902 = vmul.f32 %v558, %v631
        %v903 = vmul.f32 %v559, %v635
        %v904 = vmul.f32 %v560, %v639
        %v905 = vmul.f32 %v561, %v643
        %v906 = vmul.f32 %v562, %v647
        %v907 = vmul.f32 %v563, %v651
        %v908 = vmul.f32 %v564, %v655
        %v909 = vmul.f32 %v565, %v662
        %v910 = vmul.f32 %v566, %v666
        %v911 = vmul.f32 %v567, %v670
        %v912 = vmul.f32 %v568, %v674
        %v913 = vmul.f32 %v569, %v678
        %v914 = vmul.f32 %v570, %v682
        %v915 = vmul.f32 %v571, %v686
        %v916 = vmul.f32 %v572, %v690
        %v917 = vmul.f32 %v573, %v697
        %v918 = vmul.f32 %v574, %v701
        %v919 = vmul.f32 %v575, %v705
        %v920 = vmul.f32 %v576, %v709
        %v921 = vmul.f32 %v577, %v713
        %v922 = vmul.f32 %v578, %v717
        %v923 = vmul.f32 %v579, %v721
        %v924 = vmul.f32 %v580, %v725
        %v925 = vmul.f32 %v581, %v732
        %v926 = vmul.f32 %v582, %v736
        %v927 = vmul.f32 %v583, %v740
        %v928 = vmul.f32 %v584, %v744
        %v929 = vmul.f32 %v585, %v748
        %v930 = vmul.f32 %v586, %v752
        %v931 = vmul.f32 %v587, %v756
        %v932 = vmul.f32 %v588, %v760
        %v933 = vmul.f32 %v589, %v767
        %v934 = vmul.f32 %v590, %v771
        %v935 = vmul.f32 %v591, %v775
        %v936 = vmul.f32 %v592, %v779
        %v937 = vmul.f32 %v593, %v783
        %v938 = vmul.f32 %v594, %v787
        %v939 = vmul.f32 %v595, %v791
        %v940 = vmul.f32 %v596, %v795
        %v941 = vmul.f32 %v597, %v802
        %v942 = vmul.f32 %v598, %v806
        %v943 = vmul.f32 %v599, %v810
        %v944 = vmul.f32 %v600, %v814
        %v945 = vmul.f32 %v601, %v818
        %v946 = vmul.f32 %v602, %v822
        %v947 = vmul.f32 %v603, %v826
        %v948 = vmul.f32 %v604, %v830
        %v949 = vmul.f32 %v605, %v837
        %v950 = vmul.f32 %v606, %v841
        %v951 = vmul.f32 %v607, %v845
        %v952 = vmul.f32 %v608, %v849
        %v953 = vmul.f32 %v609, %v853
        %v954 = vmul.f32 %v610, %v857
        %v955 = vmul.f32 %v611, %v861
        %v956 = vmul.f32 %v612, %v865
        %v957 = vmul.f32 %v613, %v872
        %v958 = vmul.f32 %v614, %v876
        %v959 = vmul.f32 %v615, %v880
        %v960 = vmul.f32 %v616, %v884
        %v961 = vmul.f32 %v617, %v888
        %v962 = vmul.f32 %v618, %v892
        %v963 = vmul.f32 %v619, %v896
        %v964 = vmul.f32 %v620, %v900
        %v965 = vadd.f32 %v901, %v902
        %v966 = vadd.f32 %v965, %v903
        %v967 = vadd.f32 %v966, %v904
        %v968 = vadd.f32 %v967, %v905
        %v969 = vadd.f32 %v968, %v906
        %v970 = vadd.f32 %v969, %v907
        %v971 = vadd.f32 %v970, %v908
        %v972 = vrot.slane %v971, 4
        %v973 = vadd.f32 %v971, %v972
        %v974 = vrot.slane %v973, 2
        %v975 = vadd.f32 %v973, %v974
        %v976 = vrot.slane %v975, 1
        %v977 = vadd.f32 %v975, %v976
        %v978 = vadd.f32 %v909, %v910
        %v979 = vadd.f32 %v978, %v911
        %v980 = vadd.f32 %v979, %v912
        %v981 = vadd.f32 %v980, %v913
        %v982 = vadd.f32 %v981, %v914
        %v983 = vadd.f32 %v982, %v915
        %v984 = vadd.f32 %v983, %v916
        %v985 = vrot.slane %v984, 4
        %v986 = vadd.f32 %v984, %v985
        %v987 = vrot.slane %v986, 2
        %v988 = vadd.f32 %v986, %v987
        %v989 = vrot.slane %v988, 1
        %v990 = vadd.f32 %v988, %v989
        %v991 = vadd.f32 %v917, %v918
        %v992 = vadd.f32 %v991, %v919
        %v993 = vadd.f32 %v992, %v920
        %v994 = vadd.f32 %v993, %v921
        %v995 = vadd.f32 %v994, %v922
        %v996 = vadd.f32 %v995, %v923
        %v997 = vadd.f32 %v996, %v924
        %v998 = vrot.slane %v997, 4
        %v999 = vadd.f32 %v997, %v998
        %v1000 = vrot.slane %v999, 2
        %v1001 = vadd.f32 %v999, %v1000
        %v1002 = vrot.slane %v1001, 1
        %v1003 = vadd.f32 %v1001, %v1002
        %v1004 = vadd.f32 %v925, %v926
        %v1005 = vadd.f32 %v1004, %v927
        %v1006 = vadd.f32 %v1005, %v928
        %v1007 = vadd.f32 %v1006, %v929
        %v1008 = vadd.f32 %v1007, %v930
        %v1009 = vadd.f32 %v1008, %v931
        %v1010 = vadd.f32 %v1009, %v932
        %v1011 = vrot.slane %v1010, 4
        %v1012 = vadd.f32 %v1010, %v1011
        %v1013 = vrot.slane %v1012, 2
        %v1014 = vadd.f32 %v1012, %v1013
        %v1015 = vrot.slane %v1014, 1
        %v1016 = vadd.f32 %v1014, %v1015
        %v1017 = vadd.f32 %v933, %v934
        %v1018 = vadd.f32 %v1017, %v935
        %v1019 = vadd.f32 %v1018, %v936
        %v1020 = vadd.f32 %v1019, %v937
        %v1021 = vadd.f32 %v1020, %v938
        %v1022 = vadd.f32 %v1021, %v939
        %v1023 = vadd.f32 %v1022, %v940
        %v1024 = vrot.slane %v1023, 4
        %v1025 = vadd.f32 %v1023, %v1024
        %v1026 = vrot.slane %v1025, 2
        %v1027 = vadd.f32 %v1025, %v1026
        %v1028 = vrot.slane %v1027, 1
        %v1029 = vadd.f32 %v1027, %v1028
        %v1030 = vadd.f32 %v941, %v942
        %v1031 = vadd.f32 %v1030, %v943
        %v1032 = vadd.f32 %v1031, %v944
        %v1033 = vadd.f32 %v1032, %v945
        %v1034 = vadd.f32 %v1033, %v946
        %v1035 = vadd.f32 %v1034, %v947
        %v1036 = vadd.f32 %v1035, %v948
        %v1037 = vrot.slane %v1036, 4
        %v1038 = vadd.f32 %v1036, %v1037
        %v1039 = vrot.slane %v1038, 2
        %v1040 = vadd.f32 %v1038, %v1039
        %v1041 = vrot.slane %v1040, 1
        %v1042 = vadd.f32 %v1040, %v1041
        %v1043 = vadd.f32 %v949, %v950
        %v1044 = vadd.f32 %v1043, %v951
        %v1045 = vadd.f32 %v1044, %v952
        %v1046 = vadd.f32 %v1045, %v953
        %v1047 = vadd.f32 %v1046, %v954
        %v1048 = vadd.f32 %v1047, %v955
        %v1049 = vadd.f32 %v1048, %v956
        %v1050 = vrot.slane %v1049, 4
        %v1051 = vadd.f32 %v1049, %v1050
        %v1052 = vrot.slane %v1051, 2
        %v1053 = vadd.f32 %v1051, %v1052
        %v1054 = vrot.slane %v1053, 1
        %v1055 = vadd.f32 %v1053, %v1054
        %v1056 = vadd.f32 %v957, %v958
        %v1057 = vadd.f32 %v1056, %v959
        %v1058 = vadd.f32 %v1057, %v960
        %v1059 = vadd.f32 %v1058, %v961
        %v1060 = vadd.f32 %v1059, %v962
        %v1061 = vadd.f32 %v1060, %v963
        %v1062 = vadd.f32 %v1061, %v964
        %v1063 = vrot.slane %v1062, 4
        %v1064 = vadd.f32 %v1062, %v1063
        %v1065 = vrot.slane %v1064, 2
        %v1066 = vadd.f32 %v1064, %v1065
        %v1067 = vrot.slane %v1066, 1
        %v1068 = vadd.f32 %v1066, %v1067
        %v1070 = vrot.slane %v556, 1
        %v1071 = vrot.slane %v556, 2
        %v1072 = vrot.slane %v556, 3
        %v1073 = vrot.slane %v556, 4
        %v1074 = vrot.slane %v556, 5
        %v1075 = vrot.slane %v556, 6
        %v1076 = vrot.slane %v556, 7
        %v1085 = vadd.f32 %v977, %v556
        %v1086 = vadd.f32 %v990, %v1070
        %v1087 = vadd.f32 %v1003, %v1071
        %v1088 = vadd.f32 %v1016, %v1072
        %v1089 = vadd.f32 %v1029, %v1073
        %v1090 = vadd.f32 %v1042, %v1074
        %v1091 = vadd.f32 %v1055, %v1075
        %v1092 = vadd.f32 %v1068, %v1076
        %v1093 = vmul.f32 %v1085, 0.17677669
        %v1094 = vmul.f32 %v1086, 0.17677669
        %v1095 = vmul.f32 %v1087, 0.17677669
        %v1096 = vmul.f32 %v1088, 0.17677669
        %v1097 = vmul.f32 %v1089, 0.17677669
        %v1098 = vmul.f32 %v1090, 0.17677669
        %v1099 = vmul.f32 %v1091, 0.17677669
        %v1100 = vmul.f32 %v1092, 0.17677669
        %v1101 = vld [vmem:[%s404] sm:$0xff]
        %v1102 = vld [vmem:[#allocation8] sm:$0xff]
        %v1103 = vld [vmem:[#allocation8 + $0x8] sm:$0xff]
        %v1104 = vld [vmem:[#allocation8 + $0x10] sm:$0xff]
        %v1105 = vld [vmem:[#allocation8 + $0x18] sm:$0xff]
        %v1106 = vld [vmem:[#allocation8 + $0x20] sm:$0xff]
        %v1107 = vld [vmem:[#allocation8 + $0x28] sm:$0xff]
        %v1108 = vld [vmem:[#allocation8 + $0x30] sm:$0xff]
        %v1109 = vld [vmem:[#allocation8 + $0x38] sm:$0xff]
        %v1110 = vld [vmem:[#allocation8 + $0x40] sm:$0xff]
        %v1111 = vld [vmem:[#allocation8 + $0x48] sm:$0xff]
        %v1112 = vld [vmem:[#allocation8 + $0x50] sm:$0xff]
        %v1113 = vld [vmem:[#allocation8 + $0x58] sm:$0xff]
        %v1114 = vld [vmem:[#allocation8 + $0x60] sm:$0xff]
        %v1115 = vld [vmem:[#allocation8 + $0x68] sm:$0xff]
        %v1116 = vld [vmem:[#allocation8 + $0x70] sm:$0xff]
        %v1117 = vld [vmem:[#allocation8 + $0x78] sm:$0xff]
        %v1118 = vld [vmem:[%s7] sm:$0x1]
        %v1120 = vlaneseq
        %v1121 = vshrl.u32 %v1120, 7
        %v1122 = vsub.s32 0, %v1121
        %v1123 = vrot.slane %v1118, %v1122
        %1125 = vmatprep.subr.mxu0 0.0
        %1126 = vmatpush1.msra.mxu0 %v1117
        %1127 = vmatprep.subr.mxu0 0.0
        %1128 = vmatpush1.msra.mxu0 %v1116
        %1129 = vmatprep.subr.mxu0 0.0
        %1130 = vmatpush1.msra.mxu0 %v1115
        %1131 = vmatprep.subr.mxu0 0.0
        %1132 = vmatpush1.msra.mxu0 %v1114
        %1133 = vmatprep.subr.mxu0 0.0
        %1134 = vmatpush1.msra.mxu0 %v1113
        %1135 = vmatprep.subr.mxu0 0.0
        %1136 = vmatpush1.msra.mxu0 %v1112
        %1137 = vmatprep.subr.mxu0 0.0
        %1138 = vmatpush1.msra.mxu0 %v1111
        %1139 = vmatprep.subr.mxu0 0.0
        %1140 = vmatpush1.msra.mxu0 %v1110
        %1141 = vmatprep.subr.mxu0 0.0
        %1142 = vmatpush1.msra.mxu0 %v1109
        %1143 = vmatprep.subr.mxu0 0.0
        %1144 = vmatpush1.msra.mxu0 %v1108
        %1145 = vmatprep.subr.mxu0 0.0
        %1146 = vmatpush1.msra.mxu0 %v1107
        %1147 = vmatprep.subr.mxu0 0.0
        %1148 = vmatpush1.msra.mxu0 %v1106
        %1149 = vmatprep.subr.mxu0 0.0
        %1150 = vmatpush1.msra.mxu0 %v1105
        %1151 = vmatprep.subr.mxu0 0.0
        %1152 = vmatpush1.msra.mxu0 %v1104
        %1153 = vmatprep.subr.mxu0 0.0
        %1154 = vmatpush1.msra.mxu0 %v1103
        %1155 = vmatprep.subr.mxu0 0.0
        %1156 = vmatpush1.msra.mxu0 %v1102
        %1157 = vmatprep.subr.mxu0 0.0
        %1158 = vmatpush2.msra.mxu0 0.0
        %1159 = vmatprep.subr.mxu0 0.0
        %1160 = vmatpush2.msra.mxu0 0.0
        %1161 = vmatprep.subr.mxu0 0.0
        %1162 = vmatpush2.msra.mxu0 0.0
        %1163 = vmatprep.subr.mxu0 0.0
        %1164 = vmatpush2.msra.mxu0 0.0
        %1165 = vmatprep.subr.mxu0 0.0
        %1166 = vmatpush2.msra.mxu0 0.0
        %1167 = vmatprep.subr.mxu0 0.0
        %1168 = vmatpush2.msra.mxu0 0.0
        %1169 = vmatprep.subr.mxu0 0.0
        %1170 = vmatpush2.msra.mxu0 0.0
        %1171 = vmatprep.subr.mxu0 0.0
        %1172 = vmatpush2.msra.mxu0 0.0
        %1173 = vmatprep.subr.mxu0 0.0
        %1174 = vmatpush2.msra.mxu0 0.0
        %1175 = vmatprep.subr.mxu0 0.0
        %1176 = vmatpush2.msra.mxu0 0.0
        %1177 = vmatprep.subr.mxu0 0.0
        %1178 = vmatpush2.msra.mxu0 0.0
        %1179 = vmatprep.subr.mxu0 0.0
        %1180 = vmatpush2.msra.mxu0 0.0
        %1181 = vmatprep.subr.mxu0 0.0
        %1182 = vmatpush2.msra.mxu0 0.0
        %1183 = vmatprep.subr.mxu0 0.0
        %1184 = vmatpush2.msra.mxu0 0.0
        %1185 = vmatprep.subr.mxu0 0.0
        %1186 = vmatpush2.msra.mxu0 0.0
        %1187 = vmatprep.subr.mxu0 0.0
        %1188 = vmatpush2.msra.mxu0 0.0
        %1189 = vmatprep.mubr.f32.mxu0 0.0
        %1190 = vmatmul.mubr.f32.gmra.mxu0 %v1101
        %v1191 = vpop.f32.mrf.mxu0
        %v1192 = vadd.f32 %v1123, %v1191
        %v1193 = vpop.f32.mrf.mxu0
        %1194 = vdwg.mxu0
        %v1203 = vrot.slane %v1094, 7
        %vm1204 = vcmask 1041409
        %v1205 = vsel %vm1204, %v1203, %v1093
        %v1206 = vrot.slane %v1095, 6
        %vm1207 = vcmask 1042434
        %v1208 = vsel %vm1207, %v1206, %v1205
        %v1209 = vrot.slane %v1096, 5
        %vm1210 = vcmask 1043459
        %v1211 = vsel %vm1210, %v1209, %v1208
        %v1212 = vrot.slane %v1097, 4
        %vm1213 = vcmask 1044484
        %v1214 = vsel %vm1213, %v1212, %v1211
        %v1215 = vrot.slane %v1098, 3
        %vm1216 = vcmask 1045509
        %v1217 = vsel %vm1216, %v1215, %v1214
        %v1218 = vrot.slane %v1099, 2
        %vm1219 = vcmask 1046534
        %v1220 = vsel %vm1219, %v1218, %v1217
        %v1221 = vrot.slane %v1100, 1
        %vm1222 = vcmask 1047559
        %v1223 = vsel %vm1222, %v1221, %v1220
        %v1225 = vmul.f32 %v1192, %v1223
        %v1226 = vlaneseq
        %v1227 = vand.u32 %v1226, 127
        %v1228 = vld [vmem:[%s466] sm:$0xff]
        %1229 = vset.pattern.permute.xlu0 0
        %1230 = vperm.xlu0 %1229, %v1228
        %v1231 = vpop.permute.xlu0 %1230
        %vm1232 = vcmp.ge.s32.totalorder %v1227, %v1231
        %v1233 = vsel %vm1232, -10000.0, %v1225
        %1234 = vst [vmem:[%s454] sm:$0xff] %v1233
        %vm1235 = vcmp.ge.s32.totalorder %v1227, 96
        %v1236 = vsel %vm1235, -inf, %v1233
        %1237 = vmax.xlane.f32.xlu0 %v1236
        %v1238 = vpop.xlane.xlu0 %1237
        %v1239 = vsub.f32 %v1236, %v1238
        %v1240 = vmul.f32 %v1239, 1.442695
        %v1241 = vpow.pop %v1240
        %1242 = vadd.xlane.f32.xlu0 %v1241
        %v1243 = vpop.xlane.xlu0 %1242
        %v1244 = vrcp.pop %v1243
        %v1245 = vmul.f32 %v1241, %v1244
        %1246 = vst [vmem:[%s461] sm:$0xff] %v1245
        %s1247 = sand.u32 %s230, 1
        %s1248 = scalar_lea.sflag [#allocation4], %s1247
        %s1249 = sand.u32 %s230, 1
        %s1250 = smul.addr %s1249, 8
        %s1251 = scalar_lea.vmem [#allocation10], %s1250
        %s1252 = sand.u32 %s256, 1
        %s1253 = scalar_lea.sflag [#allocation12], %s1252
        %s1254 = sand.u32 %s256, 1
        %s1255 = smul.addr %s1254, 8
        %s1256 = scalar_lea.vmem [#allocation11], %s1255
        // Predicated region
        $region69: #{tpu_custom_call.1} parent=51 // pred_check
          %p1257 = pneg %p240
        $region70: #{tpu_custom_call.1} parent=51 // pred_check_branch
          %1259 = sbr.rel (%p1257) target = $region72
        $region71: #{tpu_custom_call.1} parent=51 // pred_region
          %s1261 = ssub.s32 128, 128
          %1262 = vsyncadd %s1248, %s1261
          %s1263 = smul.addr %s34, 128
          %s1264 = scalar_lea.hbm %s8, %s1263
          %s1266 = sshll.u32 %s1251, 4
          %s1267 = int_to_ptr.vmem [resolvable:$true] %s1266
          %1269 = dma.vmem_to_hbm [thread:$0]  %s1267, 128, %s1264, %s1248
        $region72: #{tpu_custom_call.1} parent=51 // pred_fallthru
          _
        // Predicated region
        $region73: #{tpu_custom_call.1} parent=51 // pred_check
          %p1270 = pneg %p266
        $region74: #{tpu_custom_call.1} parent=51 // pred_check_branch
          %1272 = sbr.rel (%p1270) target = $region76
        $region75: #{tpu_custom_call.1} parent=51 // pred_region
          %s1274 = ssub.s32 128, 128
          %1275 = vsyncadd %s1253, %s1274
          %s1276 = smul.addr %s34, 128
          %s1277 = scalar_lea.hbm %s9, %s1276
          %s1279 = sshll.u32 %s1256, 4
          %s1280 = int_to_ptr.vmem [resolvable:$true] %s1279
          %1282 = dma.vmem_to_hbm [thread:$0]  %s1280, 128, %s1277, %s1253
        $region76: #{tpu_custom_call.1} parent=51 // pred_fallthru
          _
      $region52: #{tpu_custom_call.1} parent=5 // pred_fallthru
        _
      %p1283 = scmp.le.s32.totalorder 2, %s29
      // Predicated region
      $region77: #{tpu_custom_call.1} parent=5 // pred_check
        %p1284 = pneg %p1283
      $region78: #{tpu_custom_call.1} parent=5 // pred_check_branch
        %1286 = sbr.rel (%p1284) target = $region80
      $region79: #{tpu_custom_call.1} parent=5 // pred_region
        %s1287 = ssub.s32 %s29, 2
        // Predicated region
        $region81: #{tpu_custom_call.1} parent=79 // pred_check
          %p1288 = pneg %p246
        $region82: #{tpu_custom_call.1} parent=79 // pred_check_branch
          %1290 = sbr.rel (%p1288) target = $region84
        $region83: #{tpu_custom_call.1} parent=79 // pred_region
          %s1291 = sand.u32 %s231, 1
          %s1292 = scalar_lea.sflag [#allocation4], %s1291
          %s1293 = sand.u32 %s231, 1
          %s1294 = smul.addr %s1293, 8
          %s1295 = scalar_lea.vmem [#allocation10], %s1294
          %1296 = dma.done %s1292, 128
        $region84: #{tpu_custom_call.1} parent=79 // pred_fallthru
          _
        // Predicated region
        $region85: #{tpu_custom_call.1} parent=79 // pred_check
          %p1297 = pneg %p272
        $region86: #{tpu_custom_call.1} parent=79 // pred_check_branch
          %1299 = sbr.rel (%p1297) target = $region88
        $region87: #{tpu_custom_call.1} parent=79 // pred_region
          %s1300 = sand.u32 %s257, 1
          %s1301 = scalar_lea.sflag [#allocation12], %s1300
          %s1302 = sand.u32 %s257, 1
          %s1303 = smul.addr %s1302, 8
          %s1304 = scalar_lea.vmem [#allocation11], %s1303
          %1305 = dma.done %s1301, 128
        $region88: #{tpu_custom_call.1} parent=79 // pred_fallthru
          _
      $region80: #{tpu_custom_call.1} parent=5 // pred_fallthru
        _
    $region6: #{tpu_custom_call.1} parent=1 // loop_footer
      %s33 = sadd.s32 1, %s29
    $region7: #{tpu_custom_call.1} parent=1 // loop_footer_branch
      %28 = sbr.rel target = $region3
    $region8: #{tpu_custom_call.1} parent=1 // loop_exit
      _
    %1306 = vsyncpa [#allocation3], 1
    %s1307 = scalar_lea.sflag [#allocation3], 1
    %1308 = vsyncpa %s1307, 1
    %1309 = vsyncpa [#allocation6], 1
    %s1310 = scalar_lea.sflag [#allocation6], 1
    %1311 = vsyncpa %s1310, 1
    %1312 = vsyncpa [#allocation9], 1
    %1313 = vsyncpa [#allocation4], 1
    %s1314 = scalar_lea.sflag [#allocation4], 1
    %1315 = vsyncpa %s1314, 1
    %1316 = vsyncpa [#allocation12], 1
    %s1317 = scalar_lea.sflag [#allocation12], 1
    %1318 = vsyncpa %s1317, 1

// kernel: tpu_custom_call.1
$region0: #{tpu_custom_call.1}
  #allocation0 [shape = 'u32[]', space=smem, size = 0x4, offset = 0x4, fixed_abs, tag = 'smem constant byte address 0x4 - core index']
  #allocation1 [shape = 'u32[144,128]{1,0:T(1,128)}', space=vmem, size = 0x12000, scoped, tag = 'internal scratch']
  %s0 = inlined_call_operand.hbm [shape: f32[24,64,128], index: 0, kind: input, shape index: {}]
  %s1 = inlined_call_operand.hbm [shape: f32[24,32], index: 1, kind: input, shape index: {}]
  %s2 = inlined_call_operand.hbm [shape: f32[24,128], index: 2, kind: input, shape index: {}]
  %s3 = inlined_call_operand.vmem [shape: s32[24,1], index: 3, kind: input, shape index: {}]
  %s4 = inlined_call_operand.vmem [shape: f32[32,64], index: 4, kind: input, shape index: {}]
  %s5 = inlined_call_operand.vmem [shape: f32[1,32], index: 5, kind: input, shape index: {}]
  %s6 = inlined_call_operand.hbm [shape: f32[128,128], index: 6, kind: input, shape index: {}]
  %s7 = inlined_call_operand.vmem [shape: f32[1,128], index: 7, kind: input, shape index: {}]
  %s8 = inlined_call_operand.hbm [shape: f32[24,128], index: 8, kind: output, shape index: {0}]
  %s9 = inlined_call_operand.hbm [shape: f32[24,128], index: 9, kind: output, shape index: {1}]
  %10 = xla_tuple %s8, %s9
  %s11 = sld [smem:[#allocation0]]
  $region89: #{tpu_custom_call.1} parent=0
    _
  %s13 = ssub.s32 1, %s11
  %s14 = scalar_select 0, %s13, %s11
  $region1: #{tpu_custom_call.1} parent=0
    #allocation2 [shape = 'u8[524288]{0}', space=vmem, size = 0x80000, scoped, tag = 'input window, operand 0']
    #allocation3 [shape = 's32[2]{0}', space=sflag, size = 0x8, scoped, tag = 'scoped memory for tpu_custom_call.1']
    #allocation4 [shape = 's32[2]{0}', space=sflag, size = 0x8, scoped, tag = 'scoped memory for tpu_custom_call.1']
    #allocation5 [shape = 'u8[8192]{0}', space=vmem, size = 0x2000, scoped, tag = 'input window, operand 1']
    #allocation6 [shape = 's32[2]{0}', space=sflag, size = 0x8, scoped, tag = 'scoped memory for tpu_custom_call.1']
    #allocation7 [shape = 'u8[8192]{0}', space=vmem, size = 0x2000, scoped, tag = 'input window, operand 2']
    #allocation8 [shape = 'u8[65536]{0}', space=vmem, size = 0x10000, scoped, tag = 'input window, operand 6, single buffered']
    #allocation9 [shape = 's32[1]{0}', space=sflag, size = 0x4, scoped, tag = 'scoped memory for tpu_custom_call.1']
    #allocation10 [shape = 'u8[8192]{0}', space=vmem, size = 0x2000, scoped, tag = 'output window, operand 0']
    #allocation11 [shape = 'u8[8192]{0}', space=vmem, size = 0x2000, scoped, tag = 'output window, operand 1']
    #allocation12 [shape = 's32[2]{0}', space=sflag, size = 0x8, scoped, tag = 'scoped memory for tpu_custom_call.1']
    %15 = vsyncpa [#allocation3], 0
    %s16 = scalar_lea.sflag [#allocation3], 1
    %17 = vsyncpa %s16, 0
    %18 = vsyncpa [#allocation6], 0
    %s19 = scalar_lea.sflag [#allocation6], 1
    %20 = vsyncpa %s19, 0
    %21 = vsyncpa [#allocation9], 0
    %22 = vsyncpa [#allocation4], 0
    %s23 = scalar_lea.sflag [#allocation4], 1
    %24 = vsyncpa %s23, 0
    %25 = vsyncpa [#allocation12], 0
    %s26 = scalar_lea.sflag [#allocation12], 1
    %27 = vsyncpa %s26, 0
    loop: start=0, step=1, limit=5
    $region2: #{tpu_custom_call.1} parent=1 // loop_pre_header
      _
    $region3: #{tpu_custom_call.1} parent=1 // loop_header
      %s29 = sphi 0, %s33
      %p30 = scmp.ge.s32.totalorder %s29, 5
      %s39 = sphi 0, %s41
      %s42 = sphi 0, %s39
      %s43 = sphi 0, %s42
      %s59 = sphi 0, %s43
      %s65 = sphi 0, %s67
      %s68 = sphi 0, %s65
      %s69 = sphi 0, %s68
      %s85 = sphi 0, %s69
      %s91 = sphi 0, %s93
      %s94 = sphi 0, %s91
      %s95 = sphi 0, %s94
      %s111 = sphi 0, %s95
      %s117 = sphi 0, %s119
      %s120 = sphi 0, %s117
      %s121 = sphi 0, %s120
      %s137 = sphi 0, %s121
      %s141 = sphi 0, %s141
      %s143 = sphi 0, %s141
      %s144 = sphi 0, %s143
      %s158 = sphi 0, %s144
      %s162 = sphi 0, %s162
      %s164 = sphi 0, %s162
      %s165 = sphi 0, %s164
      %s179 = sphi 0, %s165
      %s183 = sphi 0, %s183
      %s185 = sphi 0, %s183
      %s186 = sphi 0, %s185
      %s200 = sphi 0, %s186
      %s204 = sphi 0, %s204
      %s206 = sphi 0, %s204
      %s207 = sphi 0, %s206
      %s221 = sphi 0, %s207
      %s227 = sphi 0, %s229
      %s230 = sphi 0, %s227
      %s231 = sphi 0, %s230
      %s247 = sphi 0, %s231
      %s253 = sphi 0, %s255
      %s256 = sphi 0, %s253
      %s257 = sphi 0, %s256
      %s273 = sphi 0, %s257
    $region4: #{tpu_custom_call.1} parent=1 // loop_header_branch
      %32 = sbr.rel (%p30) target = $region8
    $region5: #{tpu_custom_call.1} parent=1 // loop_body
      %s34 = ssub.s32 %s29, 1
      %s35 = ssub.s32 %s29, 2
      %s36 = sadd.s32 %s29, 1
      %s37 = ssub.s32 %s29, %s36
      %p38 = scmp.eq.s32.totalorder %s37, 0
      %s40 = sadd.s32 %s39, 1
      %s41 = scalar_select %p38, %s39, %s40
      %p44 = pneg %p38
      %p45 = scmp.eq.s32.totalorder %s29, 2
      %p46 = por %p44, %p45
      %p47 = scmp.ne.s32.totalorder %s39, %s42
      %p48 = scmp.eq.s32.totalorder %s29, 0
      %p49 = por %p47, %p48
      %p50 = scmp.ne.s32.totalorder %s39, %s42
      %p51 = scmp.eq.s32.totalorder %s34, 2
      %p52 = por %p50, %p51
      %p53 = scmp.ne.s32.totalorder %s42, %s43
      %p54 = scmp.eq.s32.totalorder %s34, 0
      %p55 = por %p53, %p54
      %p56 = scmp.ne.s32.totalorder %s42, %s43
      %p57 = scmp.eq.s32.totalorder %s35, 2
      %p58 = por %p56, %p57
      %p60 = scmp.ne.s32.totalorder %s43, %s59
      %p61 = scmp.eq.s32.totalorder %s35, 0
      %p62 = por %p60, %p61
      %s63 = ssub.s32 %s29, %s36
      %p64 = scmp.eq.s32.totalorder %s63, 0
      %s66 = sadd.s32 %s65, 1
      %s67 = scalar_select %p64, %s65, %s66
      %p70 = pneg %p64
      %p71 = scmp.eq.s32.totalorder %s29, 2
      %p72 = por %p70, %p71
      %p73 = scmp.ne.s32.totalorder %s65, %s68
      %p74 = scmp.eq.s32.totalorder %s29, 0
      %p75 = por %p73, %p74
      %p76 = scmp.ne.s32.totalorder %s65, %s68
      %p77 = scmp.eq.s32.totalorder %s34, 2
      %p78 = por %p76, %p77
      %p79 = scmp.ne.s32.totalorder %s68, %s69
      %p80 = scmp.eq.s32.totalorder %s34, 0
      %p81 = por %p79, %p80
      %p82 = scmp.ne.s32.totalorder %s68, %s69
      %p83 = scmp.eq.s32.totalorder %s35, 2
      %p84 = por %p82, %p83
      %p86 = scmp.ne.s32.totalorder %s69, %s85
      %p87 = scmp.eq.s32.totalorder %s35, 0
      %p88 = por %p86, %p87
      %s89 = ssub.s32 %s29, %s36
      %p90 = scmp.eq.s32.totalorder %s89, 0
      %s92 = sadd.s32 %s91, 1
      %s93 = scalar_select %p90, %s91, %s92
      %p96 = pneg %p90
      %p97 = scmp.eq.s32.totalorder %s29, 2
      %p98 = por %p96, %p97
      %p99 = scmp.ne.s32.totalorder %s91, %s94
      %p100 = scmp.eq.s32.totalorder %s29, 0
      %p101 = por %p99, %p100
      %p102 = scmp.ne.s32.totalorder %s91, %s94
      %p103 = scmp.eq.s32.totalorder %s34, 2
      %p104 = por %p102, %p103
      %p105 = scmp.ne.s32.totalorder %s94, %s95
      %p106 = scmp.eq.s32.totalorder %s34, 0
      %p107 = por %p105, %p106
      %p108 = scmp.ne.s32.totalorder %s94, %s95
      %p109 = scmp.eq.s32.totalorder %s35, 2
      %p110 = por %p108, %p109
      %p112 = scmp.ne.s32.totalorder %s95, %s111
      %p113 = scmp.eq.s32.totalorder %s35, 0
      %p114 = por %p112, %p113
      %s115 = ssub.s32 %s29, %s36
      %p116 = scmp.eq.s32.totalorder %s115, 0
      %s118 = sadd.s32 %s117, 1
      %s119 = scalar_select %p116, %s117, %s118
      %p122 = pneg %p116
      %p123 = scmp.eq.s32.totalorder %s29, 2
      %p124 = por %p122, %p123
      %p125 = scmp.ne.s32.totalorder %s117, %s120
      %p126 = scmp.eq.s32.totalorder %s29, 0
      %p127 = por %p125, %p126
      %p128 = scmp.ne.s32.totalorder %s117, %s120
      %p129 = scmp.eq.s32.totalorder %s34, 2
      %p130 = por %p128, %p129
      %p131 = scmp.ne.s32.totalorder %s120, %s121
      %p132 = scmp.eq.s32.totalorder %s34, 0
      %p133 = por %p131, %p132
      %p134 = scmp.ne.s32.totalorder %s120, %s121
      %p135 = scmp.eq.s32.totalorder %s35, 2
      %p136 = por %p134, %p135
      %p138 = scmp.ne.s32.totalorder %s121, %s137
      %p139 = scmp.eq.s32.totalorder %s35, 0
      %p140 = por %p138, %p139
      %s142 = sadd.s32 %s141, 1
      %p145 = scmp.eq.s32.totalorder %s29, 2
      %p146 = scmp.ne.s32.totalorder %s141, %s143
      %p147 = scmp.eq.s32.totalorder %s29, 0
      %p148 = por %p146, %p147
      %p149 = scmp.ne.s32.totalorder %s141, %s143
      %p150 = scmp.eq.s32.totalorder %s34, 2
      %p151 = por %p149, %p150
      %p152 = scmp.ne.s32.totalorder %s143, %s144
      %p153 = scmp.eq.s32.totalorder %s34, 0
      %p154 = por %p152, %p153
      %p155 = scmp.ne.s32.totalorder %s143, %s144
      %p156 = scmp.eq.s32.totalorder %s35, 2
      %p157 = por %p155, %p156
      %p159 = scmp.ne.s32.totalorder %s144, %s158
      %p160 = scmp.eq.s32.totalorder %s35, 0
      %p161 = por %p159, %p160
      %s163 = sadd.s32 %s162, 1
      %p166 = scmp.eq.s32.totalorder %s29, 2
      %p167 = scmp.ne.s32.totalorder %s162, %s164
      %p168 = scmp.eq.s32.totalorder %s29, 0
      %p169 = por %p167, %p168
      %p170 = scmp.ne.s32.totalorder %s162, %s164
      %p171 = scmp.eq.s32.totalorder %s34, 2
      %p172 = por %p170, %p171
      %p173 = scmp.ne.s32.totalorder %s164, %s165
      %p174 = scmp.eq.s32.totalorder %s34, 0
      %p175 = por %p173, %p174
      %p176 = scmp.ne.s32.totalorder %s164, %s165
      %p177 = scmp.eq.s32.totalorder %s35, 2
      %p178 = por %p176, %p177
      %p180 = scmp.ne.s32.totalorder %s165, %s179
      %p181 = scmp.eq.s32.totalorder %s35, 0
      %p182 = por %p180, %p181
      %s184 = sadd.s32 %s183, 1
      %p187 = scmp.eq.s32.totalorder %s29, 2
      %p188 = scmp.ne.s32.totalorder %s183, %s185
      %p189 = scmp.eq.s32.totalorder %s29, 0
      %p190 = por %p188, %p189
      %p191 = scmp.ne.s32.totalorder %s183, %s185
      %p192 = scmp.eq.s32.totalorder %s34, 2
      %p193 = por %p191, %p192
      %p194 = scmp.ne.s32.totalorder %s185, %s186
      %p195 = scmp.eq.s32.totalorder %s34, 0
      %p196 = por %p194, %p195
      %p197 = scmp.ne.s32.totalorder %s185, %s186
      %p198 = scmp.eq.s32.totalorder %s35, 2
      %p199 = por %p197, %p198
      %p201 = scmp.ne.s32.totalorder %s186, %s200
      %p202 = scmp.eq.s32.totalorder %s35, 0
      %p203 = por %p201, %p202
      %s205 = sadd.s32 %s204, 1
      %p208 = scmp.eq.s32.totalorder %s29, 2
      %p209 = scmp.ne.s32.totalorder %s204, %s206
      %p210 = scmp.eq.s32.totalorder %s29, 0
      %p211 = por %p209, %p210
      %p212 = scmp.ne.s32.totalorder %s204, %s206
      %p213 = scmp.eq.s32.totalorder %s34, 2
      %p214 = por %p212, %p213
      %p215 = scmp.ne.s32.totalorder %s206, %s207
      %p216 = scmp.eq.s32.totalorder %s34, 0
      %p217 = por %p215, %p216
      %p218 = scmp.ne.s32.totalorder %s206, %s207
      %p219 = scmp.eq.s32.totalorder %s35, 2
      %p220 = por %p218, %p219
      %p222 = scmp.ne.s32.totalorder %s207, %s221
      %p223 = scmp.eq.s32.totalorder %s35, 0
      %p224 = por %p222, %p223
      %s225 = ssub.s32 %s29, %s36
      %p226 = scmp.eq.s32.totalorder %s225, 0
      %s228 = sadd.s32 %s227, 1
      %s229 = scalar_select %p226, %s227, %s228
      %p232 = pneg %p226
      %p233 = scmp.eq.s32.totalorder %s29, 2
      %p234 = por %p232, %p233
      %p235 = scmp.ne.s32.totalorder %s227, %s230
      %p236 = scmp.eq.s32.totalorder %s29, 0
      %p237 = por %p235, %p236
      %p238 = scmp.ne.s32.totalorder %s227, %s230
      %p239 = scmp.eq.s32.totalorder %s34, 2
      %p240 = por %p238, %p239
      %p241 = scmp.ne.s32.totalorder %s230, %s231
      %p242 = scmp.eq.s32.totalorder %s34, 0
      %p243 = por %p241, %p242
      %p244 = scmp.ne.s32.totalorder %s230, %s231
      %p245 = scmp.eq.s32.totalorder %s35, 2
      %p246 = por %p244, %p245
      %p248 = scmp.ne.s32.totalorder %s231, %s247
      %p249 = scmp.eq.s32.totalorder %s35, 0
      %p250 = por %p248, %p249
      %s251 = ssub.s32 %s29, %s36
      %p252 = scmp.eq.s32.totalorder %s251, 0
      %s254 = sadd.s32 %s253, 1
      %s255 = scalar_select %p252, %s253, %s254
      %p258 = pneg %p252
      %p259 = scmp.eq.s32.totalorder %s29, 2
      %p260 = por %p258, %p259
      %p261 = scmp.ne.s32.totalorder %s253, %s256
      %p262 = scmp.eq.s32.totalorder %s29, 0
      %p263 = por %p261, %p262
      %p264 = scmp.ne.s32.totalorder %s253, %s256
      %p265 = scmp.eq.s32.totalorder %s34, 2
      %p266 = por %p264, %p265
      %p267 = scmp.ne.s32.totalorder %s256, %s257
      %p268 = scmp.eq.s32.totalorder %s34, 0
      %p269 = por %p267, %p268
      %p270 = scmp.ne.s32.totalorder %s256, %s257
      %p271 = scmp.eq.s32.totalorder %s35, 2
      %p272 = por %p270, %p271
      %p274 = scmp.ne.s32.totalorder %s257, %s273
      %p275 = scmp.eq.s32.totalorder %s35, 0
      %p276 = por %p274, %p275
      %p277 = scmp.le.s32.totalorder 1, %s29
      %p278 = scmp.lt.s32.totalorder %s29, 4
      %p279 = pnand %p277, %p278
      %p280 = pneg %p279
      // Predicated region
      $region9: #{tpu_custom_call.1} parent=5 // pred_check
        _
      $region10: #{tpu_custom_call.1} parent=5 // pred_check_branch
        %282 = sbr.rel (%p279) target = $region12
      $region11: #{tpu_custom_call.1} parent=5 // pred_region
        %s283 = ssub.s32 %s29, 1
        // Predicated region
        $region13: #{tpu_custom_call.1} parent=11 // pred_check
          %p284 = pneg %p154
        $region14: #{tpu_custom_call.1} parent=11 // pred_check_branch
          %286 = sbr.rel (%p284) target = $region16
        $region15: #{tpu_custom_call.1} parent=11 // pred_region
          _
        $region16: #{tpu_custom_call.1} parent=11 // pred_fallthru
          _
        // Predicated region
        $region17: #{tpu_custom_call.1} parent=11 // pred_check
          %p287 = pneg %p175
        $region18: #{tpu_custom_call.1} parent=11 // pred_check_branch
          %289 = sbr.rel (%p287) target = $region20
        $region19: #{tpu_custom_call.1} parent=11 // pred_region
          _
        $region20: #{tpu_custom_call.1} parent=11 // pred_fallthru
          _
        // Predicated region
        $region21: #{tpu_custom_call.1} parent=11 // pred_check
          %p290 = pneg %p196
        $region22: #{tpu_custom_call.1} parent=11 // pred_check_branch
          %292 = sbr.rel (%p290) target = $region24
        $region23: #{tpu_custom_call.1} parent=11 // pred_region
          %s294 = ssub.s32 2048, 2048
          %295 = vsyncadd [#allocation9], %s294
          %s296 = sshll.u32 [#allocation8], 4
          %s297 = int_to_ptr.vmem [resolvable:$true] %s296
          %302 = dma.hbm_to_vmem [thread:$0]  %s6, 2048, %s297, [#allocation9], 128, 128, 8
        $region24: #{tpu_custom_call.1} parent=11 // pred_fallthru
          _
        // Predicated region
        $region25: #{tpu_custom_call.1} parent=11 // pred_check
          %p303 = pneg %p217
        $region26: #{tpu_custom_call.1} parent=11 // pred_check_branch
          %305 = sbr.rel (%p303) target = $region28
        $region27: #{tpu_custom_call.1} parent=11 // pred_region
          _
        $region28: #{tpu_custom_call.1} parent=11 // pred_fallthru
          _
      $region12: #{tpu_custom_call.1} parent=5 // pred_fallthru
        _
      %p306 = scmp.lt.s32.totalorder %s29, 3
      // Predicated region
      $region29: #{tpu_custom_call.1} parent=5 // pred_check
        %p307 = pneg %p306
      $region30: #{tpu_custom_call.1} parent=5 // pred_check_branch
        %309 = sbr.rel (%p307) target = $region32
      $region31: #{tpu_custom_call.1} parent=5 // pred_region
        // Predicated region
        $region33: #{tpu_custom_call.1} parent=31 // pred_check
          %p310 = pneg %p49
        $region34: #{tpu_custom_call.1} parent=31 // pred_check_branch
          %312 = sbr.rel (%p310) target = $region36
        $region35: #{tpu_custom_call.1} parent=31 // pred_region
          %s313 = sand.u32 %s39, 1
          %s314 = scalar_lea.sflag [#allocation3], %s313
          %s315 = sand.u32 %s39, 1
          %s316 = smul.addr %s315, 512
          %s317 = scalar_lea.vmem [#allocation2], %s316
          %s318 = smul.u32 8, %s29
          %s320 = ssub.s32 8192, 8192
          %321 = vsyncadd %s314, %s320
          %s322 = smul.addr %s318, 8
          %s323 = smul.addr %s322, 128
          %s324 = scalar_lea.hbm %s0, %s323
          %s325 = sshll.u32 %s317, 4
          %s326 = int_to_ptr.vmem [resolvable:$true] %s325
          %331 = dma.hbm_to_vmem [thread:$0]  %s324, 8192, %s326, %s314, 128, 128, 8
        $region36: #{tpu_custom_call.1} parent=31 // pred_fallthru
          _
        // Predicated region
        $region37: #{tpu_custom_call.1} parent=31 // pred_check
          %p332 = pneg %p75
        $region38: #{tpu_custom_call.1} parent=31 // pred_check_branch
          %334 = sbr.rel (%p332) target = $region40
        $region39: #{tpu_custom_call.1} parent=31 // pred_region
          %s335 = sand.u32 %s29, 1
          %s336 = scalar_lea.sflag [#allocation6], %s335
          %s337 = sand.u32 %s65, 1
          %s338 = smul.addr %s337, 8
          %s339 = scalar_lea.vmem [#allocation5], %s338
          %s341 = ssub.s32 128, 128
          %342 = vsyncadd %s336, %s341
          %s343 = smul.addr %s29, 128
          %s344 = scalar_lea.hbm %s1, %s343
          %s346 = sshll.u32 %s339, 4
          %s347 = int_to_ptr.vmem [resolvable:$true] %s346
          %349 = dma.hbm_to_vmem [thread:$0]  %s344, 128, %s347, %s336
        $region40: #{tpu_custom_call.1} parent=31 // pred_fallthru
          _
        // Predicated region
        $region41: #{tpu_custom_call.1} parent=31 // pred_check
          %p350 = pneg %p101
        $region42: #{tpu_custom_call.1} parent=31 // pred_check_branch
          %352 = sbr.rel (%p350) target = $region44
        $region43: #{tpu_custom_call.1} parent=31 // pred_region
          %s353 = sand.u32 %s29, 1
          %s354 = scalar_lea.sflag [#allocation6], %s353
          %s355 = sand.u32 %s91, 1
          %s356 = smul.addr %s355, 8
          %s357 = scalar_lea.vmem [#allocation7], %s356
          %s359 = ssub.s32 128, 128
          %360 = vsyncadd %s354, %s359
          %s361 = smul.addr %s29, 128
          %s362 = scalar_lea.hbm %s2, %s361
          %s364 = sshll.u32 %s357, 4
          %s365 = int_to_ptr.vmem [resolvable:$true] %s364
          %367 = dma.hbm_to_vmem [thread:$0]  %s362, 128, %s365, %s354
        $region44: #{tpu_custom_call.1} parent=31 // pred_fallthru
          _
        // Predicated region
        $region45: #{tpu_custom_call.1} parent=31 // pred_check
          %p368 = pneg %p127
        $region46: #{tpu_custom_call.1} parent=31 // pred_check_branch
          %370 = sbr.rel (%p368) target = $region48
        $region47: #{tpu_custom_call.1} parent=31 // pred_region
          %p371 = scmp.lt.s32.totalorder %s29, 2
          %s372 = scalar_select %p371, %s29, 2
          %s373 = smul.addr %s372, 8
          %s374 = scalar_lea.vmem %s3, %s373
        $region48: #{tpu_custom_call.1} parent=31 // pred_fallthru
          _
      $region32: #{tpu_custom_call.1} parent=5 // pred_fallthru
        _
      %p375 = scmp.le.s32.totalorder 1, %s29
      %p376 = scmp.lt.s32.totalorder %s29, 4
      %p377 = pnand %p375, %p376
      %p378 = pneg %p377
      // Predicated region
      $region49: #{tpu_custom_call.1} parent=5 // pred_check
        _
      $region50: #{tpu_custom_call.1} parent=5 // pred_check_branch
        %380 = sbr.rel (%p377) target = $region52
      $region51: #{tpu_custom_call.1} parent=5 // pred_region
        %s381 = ssub.s32 %s29, 1
        %s382 = sand.u32 %s42, 1
        %s383 = scalar_lea.sflag [#allocation3], %s382
        %s384 = sand.u32 %s42, 1
        %s385 = smul.addr %s384, 512
        %s386 = scalar_lea.vmem [#allocation2], %s385
        // Predicated region
        $region53: #{tpu_custom_call.1} parent=51 // pred_check
          %p387 = pneg %p55
        $region54: #{tpu_custom_call.1} parent=51 // pred_check_branch
          %389 = sbr.rel (%p387) target = $region56
        $region55: #{tpu_custom_call.1} parent=51 // pred_region
          %390 = dma.done %s383, 8192
        $region56: #{tpu_custom_call.1} parent=51 // pred_fallthru
          _
        %s391 = sand.u32 %s34, 1
        %s392 = scalar_lea.sflag [#allocation6], %s391
        %s393 = sand.u32 %s68, 1
        %s394 = smul.addr %s393, 8
        %s395 = scalar_lea.vmem [#allocation5], %s394
        // Predicated region
        $region57: #{tpu_custom_call.1} parent=51 // pred_check
          %p396 = pneg %p81
        $region58: #{tpu_custom_call.1} parent=51 // pred_check_branch
          %398 = sbr.rel (%p396) target = $region60
        $region59: #{tpu_custom_call.1} parent=51 // pred_region
          %399 = dma.done %s392, 128
        $region60: #{tpu_custom_call.1} parent=51 // pred_fallthru
          _
        %s400 = sand.u32 %s34, 1
        %s401 = scalar_lea.sflag [#allocation6], %s400
        %s402 = sand.u32 %s94, 1
        %s403 = smul.addr %s402, 8
        %s404 = scalar_lea.vmem [#allocation7], %s403
        // Predicated region
        $region61: #{tpu_custom_call.1} parent=51 // pred_check
          %p405 = pneg %p107
        $region62: #{tpu_custom_call.1} parent=51 // pred_check_branch
          %407 = sbr.rel (%p405) target = $region64
        $region63: #{tpu_custom_call.1} parent=51 // pred_region
          %408 = dma.done %s401, 128
        $region64: #{tpu_custom_call.1} parent=51 // pred_fallthru
          _
        // Predicated region
        $region65: #{tpu_custom_call.1} parent=51 // pred_check
          %p409 = pneg %p196
        $region66: #{tpu_custom_call.1} parent=51 // pred_check_branch
          %411 = sbr.rel (%p409) target = $region68
        $region67: #{tpu_custom_call.1} parent=51 // pred_region
          %412 = dma.done [#allocation9], 2048
        $region68: #{tpu_custom_call.1} parent=51 // pred_fallthru
          _
        %s413 = sand.u32 %s42, 1
        %s414 = scalar_lea.sflag [#allocation3], %s413
        %s415 = sand.u32 %s42, 1
        %s416 = smul.addr %s415, 512
        %s417 = scalar_lea.vmem [#allocation2], %s416
        %p418 = pneg %p55
        %p419 = pneg %p52
        %s420 = sand.u32 %s34, 1
        %s421 = scalar_lea.sflag [#allocation6], %s420
        %s422 = sand.u32 %s68, 1
        %s423 = smul.addr %s422, 8
        %s424 = scalar_lea.vmem [#allocation5], %s423
        %p425 = pneg %p81
        %p426 = pneg %p78
        %s427 = sand.u32 %s34, 1
        %s428 = scalar_lea.sflag [#allocation6], %s427
        %s429 = sand.u32 %s94, 1
        %s430 = smul.addr %s429, 8
        %s431 = scalar_lea.vmem [#allocation7], %s430
        %p432 = pneg %p107
        %p433 = pneg %p104
        %p434 = scmp.lt.s32.totalorder %s34, 2
        %s435 = scalar_select %p434, %s34, 2
        %s436 = smul.addr %s435, 8
        %s437 = scalar_lea.vmem %s3, %s436
        %p438 = pneg %p133
        %p439 = pneg %p130
        %p440 = pneg %p154
        %p441 = pneg %p151
        %p442 = pneg %p175
        %p443 = pneg %p172
        %p444 = pneg %p196
        %p445 = pneg %p193
        %p446 = pneg %p217
        %p447 = pneg %p214
        %p448 = pneg %p243
        %p449 = pneg %p240
        %s450 = sand.u32 %s230, 1
        %s451 = scalar_lea.sflag [#allocation4], %s450
        %s452 = sand.u32 %s230, 1
        %s453 = smul.addr %s452, 8
        %s454 = scalar_lea.vmem [#allocation10], %s453
        %p455 = pneg %p269
        %p456 = pneg %p266
        %s457 = sand.u32 %s256, 1
        %s458 = scalar_lea.sflag [#allocation12], %s457
        %s459 = sand.u32 %s256, 1
        %s460 = smul.addr %s459, 8
        %s461 = scalar_lea.vmem [#allocation11], %s460
        %s462 = smul.u32 8, %s34
        %p463 = scmp.lt.s32.totalorder %s34, 2
        %s464 = scalar_select %p463, %s34, 2
        %s465 = smul.addr %s464, 8
        %s466 = scalar_lea.vmem %s3, %s465
        %v467 = vld [vmem:[%s395] sm:$0xff]
        %v468 = vld [vmem:[%s4] sm:$0xff]
        %v469 = vld [vmem:[%s4 + $0x8] sm:$0xff]
        %v470 = vld [vmem:[%s4 + $0x10] sm:$0xff]
        %v471 = vld [vmem:[%s4 + $0x18] sm:$0xff]
        %vm472 = vcmask 261120
        %v474 = vsel %vm472, %v467, 0
        %476 = vmatprep.subr.mxu0 0.0
        %477 = vmatpush1.msra.mxu0 0.0
        %478 = vmatprep.subr.mxu0 0.0
        %479 = vmatpush1.msra.mxu0 0.0
        %480 = vmatprep.subr.mxu0 0.0
        %481 = vmatpush1.msra.mxu0 0.0
        %482 = vmatprep.subr.mxu0 0.0
        %483 = vmatpush1.msra.mxu0 0.0
        %484 = vmatprep.subr.mxu0 0.0
        %485 = vmatpush1.msra.mxu0 0.0
        %486 = vmatprep.subr.mxu0 0.0
        %487 = vmatpush1.msra.mxu0 0.0
        %488 = vmatprep.subr.mxu0 0.0
        %489 = vmatpush1.msra.mxu0 0.0
        %490 = vmatprep.subr.mxu0 0.0
        %491 = vmatpush1.msra.mxu0 0.0
        %492 = vmatprep.subr.mxu0 0.0
        %493 = vmatpush1.msra.mxu0 0.0
        %494 = vmatprep.subr.mxu0 0.0
        %495 = vmatpush1.msra.mxu0 0.0
        %496 = vmatprep.subr.mxu0 0.0
        %497 = vmatpush1.msra.mxu0 0.0
        %498 = vmatprep.subr.mxu0 0.0
        %499 = vmatpush1.msra.mxu0 0.0
        %500 = vmatprep.subr.mxu0 0.0
        %501 = vmatpush1.msra.mxu0 %v471
        %502 = vmatprep.subr.mxu0 0.0
        %503 = vmatpush1.msra.mxu0 %v470
        %504 = vmatprep.subr.mxu0 0.0
        %505 = vmatpush1.msra.mxu0 %v469
        %506 = vmatprep.subr.mxu0 0.0
        %507 = vmatpush1.msra.mxu0 %v468
        %508 = vmatprep.subr.mxu0 0.0
        %509 = vmatpush2.msra.mxu0 0.0
        %510 = vmatprep.subr.mxu0 0.0
        %511 = vmatpush2.msra.mxu0 0.0
        %512 = vmatprep.subr.mxu0 0.0
        %513 = vmatpush2.msra.mxu0 0.0
        %514 = vmatprep.subr.mxu0 0.0
        %515 = vmatpush2.msra.mxu0 0.0
        %516 = vmatprep.subr.mxu0 0.0
        %517 = vmatpush2.msra.mxu0 0.0
        %518 = vmatprep.subr.mxu0 0.0
        %519 = vmatpush2.msra.mxu0 0.0
        %520 = vmatprep.subr.mxu0 0.0
        %521 = vmatpush2.msra.mxu0 0.0
        %522 = vmatprep.subr.mxu0 0.0
        %523 = vmatpush2.msra.mxu0 0.0
        %524 = vmatprep.subr.mxu0 0.0
        %525 = vmatpush2.msra.mxu0 0.0
        %526 = vmatprep.subr.mxu0 0.0
        %527 = vmatpush2.msra.mxu0 0.0
        %528 = vmatprep.subr.mxu0 0.0
        %529 = vmatpush2.msra.mxu0 0.0
        %530 = vmatprep.subr.mxu0 0.0
        %531 = vmatpush2.msra.mxu0 0.0
        %532 = vmatprep.subr.mxu0 0.0
        %533 = vmatpush2.msra.mxu0 0.0
        %534 = vmatprep.subr.mxu0 0.0
        %535 = vmatpush2.msra.mxu0 0.0
        %536 = vmatprep.subr.mxu0 0.0
        %537 = vmatpush2.msra.mxu0 0.0
        %538 = vmatprep.subr.mxu0 0.0
        %539 = vmatpush2.msra.mxu0 0.0
        %540 = vmatprep.mubr.f32.mxu0 0.0
        %541 = vmatmul.mubr.f32.gmra.mxu0 %v474
        %v542 = vpop.f32.mrf.mxu0
        %v543 = vadd.f32 0.0, %v542
        %v544 = vpop.f32.mrf.mxu0
        %545 = vdwg.mxu0
        %v546 = vld [vmem:[%s5] sm:$0x1]
        %v548 = vlaneseq
        %v549 = vshrl.u32 %v548, 7
        %v550 = vsub.s32 0, %v549
        %v551 = vrot.slane %v546, %v550
        %v553 = vmul.f32 %v467, %v551
        %v554 = vsel %vm472, %v553, 0.0
        %555 = vadd.xlane.f32.xlu0 %v554
        %v556 = vpop.xlane.xlu0 %555
        %v557 = vld [vmem:[%s386] sm:$0xff]
        %v558 = vld [vmem:[%s386 + $0x8] sm:$0xff]
        %v559 = vld [vmem:[%s386 + $0x10] sm:$0xff]
        %v560 = vld [vmem:[%s386 + $0x18] sm:$0xff]
        %v561 = vld [vmem:[%s386 + $0x20] sm:$0xff]
        %v562 = vld [vmem:[%s386 + $0x28] sm:$0xff]
        %v563 = vld [vmem:[%s386 + $0x30] sm:$0xff]
        %v564 = vld [vmem:[%s386 + $0x38] sm:$0xff]
        %v565 = vld [vmem:[%s386 + $0x40] sm:$0xff]
        %v566 = vld [vmem:[%s386 + $0x48] sm:$0xff]
        %v567 = vld [vmem:[%s386 + $0x50] sm:$0xff]
        %v568 = vld [vmem:[%s386 + $0x58] sm:$0xff]
        %v569 = vld [vmem:[%s386 + $0x60] sm:$0xff]
        %v570 = vld [vmem:[%s386 + $0x68] sm:$0xff]
        %v571 = vld [vmem:[%s386 + $0x70] sm:$0xff]
        %v572 = vld [vmem:[%s386 + $0x78] sm:$0xff]
        %v573 = vld [vmem:[%s386 + $0x80] sm:$0xff]
        %v574 = vld [vmem:[%s386 + $0x88] sm:$0xff]
        %v575 = vld [vmem:[%s386 + $0x90] sm:$0xff]
        %v576 = vld [vmem:[%s386 + $0x98] sm:$0xff]
        %v577 = vld [vmem:[%s386 + $0xa0] sm:$0xff]
        %v578 = vld [vmem:[%s386 + $0xa8] sm:$0xff]
        %v579 = vld [vmem:[%s386 + $0xb0] sm:$0xff]
        %v580 = vld [vmem:[%s386 + $0xb8] sm:$0xff]
        %v581 = vld [vmem:[%s386 + $0xc0] sm:$0xff]
        %v582 = vld [vmem:[%s386 + $0xc8] sm:$0xff]
        %v583 = vld [vmem:[%s386 + $0xd0] sm:$0xff]
        %v584 = vld [vmem:[%s386 + $0xd8] sm:$0xff]
        %v585 = vld [vmem:[%s386 + $0xe0] sm:$0xff]
        %v586 = vld [vmem:[%s386 + $0xe8] sm:$0xff]
        %v587 = vld [vmem:[%s386 + $0xf0] sm:$0xff]
        %v588 = vld [vmem:[%s386 + $0xf8] sm:$0xff]
        %v589 = vld [vmem:[%s386 + $0x100] sm:$0xff]
        %v590 = vld [vmem:[%s386 + $0x108] sm:$0xff]
        %v591 = vld [vmem:[%s386 + $0x110] sm:$0xff]
        %v592 = vld [vmem:[%s386 + $0x118] sm:$0xff]
        %v593 = vld [vmem:[%s386 + $0x120] sm:$0xff]
        %v594 = vld [vmem:[%s386 + $0x128] sm:$0xff]
        %v595 = vld [vmem:[%s386 + $0x130] sm:$0xff]
        %v596 = vld [vmem:[%s386 + $0x138] sm:$0xff]
        %v597 = vld [vmem:[%s386 + $0x140] sm:$0xff]
        %v598 = vld [vmem:[%s386 + $0x148] sm:$0xff]
        %v599 = vld [vmem:[%s386 + $0x150] sm:$0xff]
        %v600 = vld [vmem:[%s386 + $0x158] sm:$0xff]
        %v601 = vld [vmem:[%s386 + $0x160] sm:$0xff]
        %v602 = vld [vmem:[%s386 + $0x168] sm:$0xff]
        %v603 = vld [vmem:[%s386 + $0x170] sm:$0xff]
        %v604 = vld [vmem:[%s386 + $0x178] sm:$0xff]
        %v605 = vld [vmem:[%s386 + $0x180] sm:$0xff]
        %v606 = vld [vmem:[%s386 + $0x188] sm:$0xff]
        %v607 = vld [vmem:[%s386 + $0x190] sm:$0xff]
        %v608 = vld [vmem:[%s386 + $0x198] sm:$0xff]
        %v609 = vld [vmem:[%s386 + $0x1a0] sm:$0xff]
        %v610 = vld [vmem:[%s386 + $0x1a8] sm:$0xff]
        %v611 = vld [vmem:[%s386 + $0x1b0] sm:$0xff]
        %v612 = vld [vmem:[%s386 + $0x1b8] sm:$0xff]
        %v613 = vld [vmem:[%s386 + $0x1c0] sm:$0xff]
        %v614 = vld [vmem:[%s386 + $0x1c8] sm:$0xff]
        %v615 = vld [vmem:[%s386 + $0x1d0] sm:$0xff]
        %v616 = vld [vmem:[%s386 + $0x1d8] sm:$0xff]
        %v617 = vld [vmem:[%s386 + $0x1e0] sm:$0xff]
        %v618 = vld [vmem:[%s386 + $0x1e8] sm:$0xff]
        %v619 = vld [vmem:[%s386 + $0x1f0] sm:$0xff]
        %v620 = vld [vmem:[%s386 + $0x1f8] sm:$0xff]
        %v621 = vlaneseq
        %v622 = vshrl.u32 %v621, 7
        %v623 = vsub.s32 0, %v622
        %v624 = vrot.slane %v543, %v623
        %626 = vbcast.lane.b32.xlu0 %v624, 256
        %v627 = vpop.permute.xlu0 %626
        %s629 = sor.u32 256, 8
        %630 = vbcast.lane.b32.xlu0 %v624, %s629
        %v631 = vpop.permute.xlu0 %630
        %s633 = sor.u32 256, 16
        %634 = vbcast.lane.b32.xlu0 %v624, %s633
        %v635 = vpop.permute.xlu0 %634
        %s637 = sor.u32 256, 24
        %638 = vbcast.lane.b32.xlu0 %v624, %s637
        %v639 = vpop.permute.xlu0 %638
        %s641 = sor.u32 256, 32
        %642 = vbcast.lane.b32.xlu0 %v624, %s641
        %v643 = vpop.permute.xlu0 %642
        %s645 = sor.u32 256, 40
        %646 = vbcast.lane.b32.xlu0 %v624, %s645
        %v647 = vpop.permute.xlu0 %646
        %s649 = sor.u32 256, 48
        %650 = vbcast.lane.b32.xlu0 %v624, %s649
        %v651 = vpop.permute.xlu0 %650
        %s653 = sor.u32 256, 56
        %654 = vbcast.lane.b32.xlu0 %v624, %s653
        %v655 = vpop.permute.xlu0 %654
        %v656 = vlaneseq
        %v657 = vshrl.u32 %v656, 7
        %v658 = vsub.s32 1, %v657
        %v659 = vrot.slane %v543, %v658
        %661 = vbcast.lane.b32.xlu0 %v659, 256
        %v662 = vpop.permute.xlu0 %661
        %s664 = sor.u32 256, 8
        %665 = vbcast.lane.b32.xlu0 %v659, %s664
        %v666 = vpop.permute.xlu0 %665
        %s668 = sor.u32 256, 16
        %669 = vbcast.lane.b32.xlu0 %v659, %s668
        %v670 = vpop.permute.xlu0 %669
        %s672 = sor.u32 256, 24
        %673 = vbcast.lane.b32.xlu0 %v659, %s672
        %v674 = vpop.permute.xlu0 %673
        %s676 = sor.u32 256, 32
        %677 = vbcast.lane.b32.xlu0 %v659, %s676
        %v678 = vpop.permute.xlu0 %677
        %s680 = sor.u32 256, 40
        %681 = vbcast.lane.b32.xlu0 %v659, %s680
        %v682 = vpop.permute.xlu0 %681
        %s684 = sor.u32 256, 48
        %685 = vbcast.lane.b32.xlu0 %v659, %s684
        %v686 = vpop.permute.xlu0 %685
        %s688 = sor.u32 256, 56
        %689 = vbcast.lane.b32.xlu0 %v659, %s688
        %v690 = vpop.permute.xlu0 %689
        %v691 = vlaneseq
        %v692 = vshrl.u32 %v691, 7
        %v693 = vsub.s32 2, %v692
        %v694 = vrot.slane %v543, %v693
        %696 = vbcast.lane.b32.xlu0 %v694, 256
        %v697 = vpop.permute.xlu0 %696
        %s699 = sor.u32 256, 8
        %700 = vbcast.lane.b32.xlu0 %v694, %s699
        %v701 = vpop.permute.xlu0 %700
        %s703 = sor.u32 256, 16
        %704 = vbcast.lane.b32.xlu0 %v694, %s703
        %v705 = vpop.permute.xlu0 %704
        %s707 = sor.u32 256, 24
        %708 = vbcast.lane.b32.xlu0 %v694, %s707
        %v709 = vpop.permute.xlu0 %708
        %s711 = sor.u32 256, 32
        %712 = vbcast.lane.b32.xlu0 %v694, %s711
        %v713 = vpop.permute.xlu0 %712
        %s715 = sor.u32 256, 40
        %716 = vbcast.lane.b32.xlu0 %v694, %s715
        %v717 = vpop.permute.xlu0 %716
        %s719 = sor.u32 256, 48
        %720 = vbcast.lane.b32.xlu0 %v694, %s719
        %v721 = vpop.permute.xlu0 %720
        %s723 = sor.u32 256, 56
        %724 = vbcast.lane.b32.xlu0 %v694, %s723
        %v725 = vpop.permute.xlu0 %724
        %v726 = vlaneseq
        %v727 = vshrl.u32 %v726, 7
        %v728 = vsub.s32 3, %v727
        %v729 = vrot.slane %v543, %v728
        %731 = vbcast.lane.b32.xlu0 %v729, 256
        %v732 = vpop.permute.xlu0 %731
        %s734 = sor.u32 256, 8
        %735 = vbcast.lane.b32.xlu0 %v729, %s734
        %v736 = vpop.permute.xlu0 %735
        %s738 = sor.u32 256, 16
        %739 = vbcast.lane.b32.xlu0 %v729, %s738
        %v740 = vpop.permute.xlu0 %739
        %s742 = sor.u32 256, 24
        %743 = vbcast.lane.b32.xlu0 %v729, %s742
        %v744 = vpop.permute.xlu0 %743
        %s746 = sor.u32 256, 32
        %747 = vbcast.lane.b32.xlu0 %v729, %s746
        %v748 = vpop.permute.xlu0 %747
        %s750 = sor.u32 256, 40
        %751 = vbcast.lane.b32.xlu0 %v729, %s750
        %v752 = vpop.permute.xlu0 %751
        %s754 = sor.u32 256, 48
        %755 = vbcast.lane.b32.xlu0 %v729, %s754
        %v756 = vpop.permute.xlu0 %755
        %s758 = sor.u32 256, 56
        %759 = vbcast.lane.b32.xlu0 %v729, %s758
        %v760 = vpop.permute.xlu0 %759
        %v761 = vlaneseq
        %v762 = vshrl.u32 %v761, 7
        %v763 = vsub.s32 4, %v762
        %v764 = vrot.slane %v543, %v763
        %766 = vbcast.lane.b32.xlu0 %v764, 256
        %v767 = vpop.permute.xlu0 %766
        %s769 = sor.u32 256, 8
        %770 = vbcast.lane.b32.xlu0 %v764, %s769
        %v771 = vpop.permute.xlu0 %770
        %s773 = sor.u32 256, 16
        %774 = vbcast.lane.b32.xlu0 %v764, %s773
        %v775 = vpop.permute.xlu0 %774
        %s777 = sor.u32 256, 24
        %778 = vbcast.lane.b32.xlu0 %v764, %s777
        %v779 = vpop.permute.xlu0 %778
        %s781 = sor.u32 256, 32
        %782 = vbcast.lane.b32.xlu0 %v764, %s781
        %v783 = vpop.permute.xlu0 %782
        %s785 = sor.u32 256, 40
        %786 = vbcast.lane.b32.xlu0 %v764, %s785
        %v787 = vpop.permute.xlu0 %786
        %s789 = sor.u32 256, 48
        %790 = vbcast.lane.b32.xlu0 %v764, %s789
        %v791 = vpop.permute.xlu0 %790
        %s793 = sor.u32 256, 56
        %794 = vbcast.lane.b32.xlu0 %v764, %s793
        %v795 = vpop.permute.xlu0 %794
        %v796 = vlaneseq
        %v797 = vshrl.u32 %v796, 7
        %v798 = vsub.s32 5, %v797
        %v799 = vrot.slane %v543, %v798
        %801 = vbcast.lane.b32.xlu0 %v799, 256
        %v802 = vpop.permute.xlu0 %801
        %s804 = sor.u32 256, 8
        %805 = vbcast.lane.b32.xlu0 %v799, %s804
        %v806 = vpop.permute.xlu0 %805
        %s808 = sor.u32 256, 16
        %809 = vbcast.lane.b32.xlu0 %v799, %s808
        %v810 = vpop.permute.xlu0 %809
        %s812 = sor.u32 256, 24
        %813 = vbcast.lane.b32.xlu0 %v799, %s812
        %v814 = vpop.permute.xlu0 %813
        %s816 = sor.u32 256, 32
        %817 = vbcast.lane.b32.xlu0 %v799, %s816
        %v818 = vpop.permute.xlu0 %817
        %s820 = sor.u32 256, 40
        %821 = vbcast.lane.b32.xlu0 %v799, %s820
        %v822 = vpop.permute.xlu0 %821
        %s824 = sor.u32 256, 48
        %825 = vbcast.lane.b32.xlu0 %v799, %s824
        %v826 = vpop.permute.xlu0 %825
        %s828 = sor.u32 256, 56
        %829 = vbcast.lane.b32.xlu0 %v799, %s828
        %v830 = vpop.permute.xlu0 %829
        %v831 = vlaneseq
        %v832 = vshrl.u32 %v831, 7
        %v833 = vsub.s32 6, %v832
        %v834 = vrot.slane %v543, %v833
        %836 = vbcast.lane.b32.xlu0 %v834, 256
        %v837 = vpop.permute.xlu0 %836
        %s839 = sor.u32 256, 8
        %840 = vbcast.lane.b32.xlu0 %v834, %s839
        %v841 = vpop.permute.xlu0 %840
        %s843 = sor.u32 256, 16
        %844 = vbcast.lane.b32.xlu0 %v834, %s843
        %v845 = vpop.permute.xlu0 %844
        %s847 = sor.u32 256, 24
        %848 = vbcast.lane.b32.xlu0 %v834, %s847
        %v849 = vpop.permute.xlu0 %848
        %s851 = sor.u32 256, 32
        %852 = vbcast.lane.b32.xlu0 %v834, %s851
        %v853 = vpop.permute.xlu0 %852
        %s855 = sor.u32 256, 40
        %856 = vbcast.lane.b32.xlu0 %v834, %s855
        %v857 = vpop.permute.xlu0 %856
        %s859 = sor.u32 256, 48
        %860 = vbcast.lane.b32.xlu0 %v834, %s859
        %v861 = vpop.permute.xlu0 %860
        %s863 = sor.u32 256, 56
        %864 = vbcast.lane.b32.xlu0 %v834, %s863
        %v865 = vpop.permute.xlu0 %864
        %v866 = vlaneseq
        %v867 = vshrl.u32 %v866, 7
        %v868 = vsub.s32 7, %v867
        %v869 = vrot.slane %v543, %v868
        %871 = vbcast.lane.b32.xlu0 %v869, 256
        %v872 = vpop.permute.xlu0 %871
        %s874 = sor.u32 256, 8
        %875 = vbcast.lane.b32.xlu0 %v869, %s874
        %v876 = vpop.permute.xlu0 %875
        %s878 = sor.u32 256, 16
        %879 = vbcast.lane.b32.xlu0 %v869, %s878
        %v880 = vpop.permute.xlu0 %879
        %s882 = sor.u32 256, 24
        %883 = vbcast.lane.b32.xlu0 %v869, %s882
        %v884 = vpop.permute.xlu0 %883
        %s886 = sor.u32 256, 32
        %887 = vbcast.lane.b32.xlu0 %v869, %s886
        %v888 = vpop.permute.xlu0 %887
        %s890 = sor.u32 256, 40
        %891 = vbcast.lane.b32.xlu0 %v869, %s890
        %v892 = vpop.permute.xlu0 %891
        %s894 = sor.u32 256, 48
        %895 = vbcast.lane.b32.xlu0 %v869, %s894
        %v896 = vpop.permute.xlu0 %895
        %s898 = sor.u32 256, 56
        %899 = vbcast.lane.b32.xlu0 %v869, %s898
        %v900 = vpop.permute.xlu0 %899
        %v901 = vmul.f32 %v557, %v627
        %v902 = vmul.f32 %v558, %v631
        %v903 = vmul.f32 %v559, %v635
        %v904 = vmul.f32 %v560, %v639
        %v905 = vmul.f32 %v561, %v643
        %v906 = vmul.f32 %v562, %v647
        %v907 = vmul.f32 %v563, %v651
        %v908 = vmul.f32 %v564, %v655
        %v909 = vmul.f32 %v565, %v662
        %v910 = vmul.f32 %v566, %v666
        %v911 = vmul.f32 %v567, %v670
        %v912 = vmul.f32 %v568, %v674
        %v913 = vmul.f32 %v569, %v678
        %v914 = vmul.f32 %v570, %v682
        %v915 = vmul.f32 %v571, %v686
        %v916 = vmul.f32 %v572, %v690
        %v917 = vmul.f32 %v573, %v697
        %v918 = vmul.f32 %v574, %v701
        %v919 = vmul.f32 %v575, %v705
        %v920 = vmul.f32 %v576, %v709
        %v921 = vmul.f32 %v577, %v713
        %v922 = vmul.f32 %v578, %v717
        %v923 = vmul.f32 %v579, %v721
        %v924 = vmul.f32 %v580, %v725
        %v925 = vmul.f32 %v581, %v732
        %v926 = vmul.f32 %v582, %v736
        %v927 = vmul.f32 %v583, %v740
        %v928 = vmul.f32 %v584, %v744
        %v929 = vmul.f32 %v585, %v748
        %v930 = vmul.f32 %v586, %v752
        %v931 = vmul.f32 %v587, %v756
        %v932 = vmul.f32 %v588, %v760
        %v933 = vmul.f32 %v589, %v767
        %v934 = vmul.f32 %v590, %v771
        %v935 = vmul.f32 %v591, %v775
        %v936 = vmul.f32 %v592, %v779
        %v937 = vmul.f32 %v593, %v783
        %v938 = vmul.f32 %v594, %v787
        %v939 = vmul.f32 %v595, %v791
        %v940 = vmul.f32 %v596, %v795
        %v941 = vmul.f32 %v597, %v802
        %v942 = vmul.f32 %v598, %v806
        %v943 = vmul.f32 %v599, %v810
        %v944 = vmul.f32 %v600, %v814
        %v945 = vmul.f32 %v601, %v818
        %v946 = vmul.f32 %v602, %v822
        %v947 = vmul.f32 %v603, %v826
        %v948 = vmul.f32 %v604, %v830
        %v949 = vmul.f32 %v605, %v837
        %v950 = vmul.f32 %v606, %v841
        %v951 = vmul.f32 %v607, %v845
        %v952 = vmul.f32 %v608, %v849
        %v953 = vmul.f32 %v609, %v853
        %v954 = vmul.f32 %v610, %v857
        %v955 = vmul.f32 %v611, %v861
        %v956 = vmul.f32 %v612, %v865
        %v957 = vmul.f32 %v613, %v872
        %v958 = vmul.f32 %v614, %v876
        %v959 = vmul.f32 %v615, %v880
        %v960 = vmul.f32 %v616, %v884
        %v961 = vmul.f32 %v617, %v888
        %v962 = vmul.f32 %v618, %v892
        %v963 = vmul.f32 %v619, %v896
        %v964 = vmul.f32 %v620, %v900
        %v965 = vadd.f32 %v901, %v902
        %v966 = vadd.f32 %v965, %v903
        %v967 = vadd.f32 %v966, %v904
        %v968 = vadd.f32 %v967, %v905
        %v969 = vadd.f32 %v968, %v906
        %v970 = vadd.f32 %v969, %v907
        %v971 = vadd.f32 %v970, %v908
        %v972 = vrot.slane %v971, 4
        %v973 = vadd.f32 %v971, %v972
        %v974 = vrot.slane %v973, 2
        %v975 = vadd.f32 %v973, %v974
        %v976 = vrot.slane %v975, 1
        %v977 = vadd.f32 %v975, %v976
        %v978 = vadd.f32 %v909, %v910
        %v979 = vadd.f32 %v978, %v911
        %v980 = vadd.f32 %v979, %v912
        %v981 = vadd.f32 %v980, %v913
        %v982 = vadd.f32 %v981, %v914
        %v983 = vadd.f32 %v982, %v915
        %v984 = vadd.f32 %v983, %v916
        %v985 = vrot.slane %v984, 4
        %v986 = vadd.f32 %v984, %v985
        %v987 = vrot.slane %v986, 2
        %v988 = vadd.f32 %v986, %v987
        %v989 = vrot.slane %v988, 1
        %v990 = vadd.f32 %v988, %v989
        %v991 = vadd.f32 %v917, %v918
        %v992 = vadd.f32 %v991, %v919
        %v993 = vadd.f32 %v992, %v920
        %v994 = vadd.f32 %v993, %v921
        %v995 = vadd.f32 %v994, %v922
        %v996 = vadd.f32 %v995, %v923
        %v997 = vadd.f32 %v996, %v924
        %v998 = vrot.slane %v997, 4
        %v999 = vadd.f32 %v997, %v998
        %v1000 = vrot.slane %v999, 2
        %v1001 = vadd.f32 %v999, %v1000
        %v1002 = vrot.slane %v1001, 1
        %v1003 = vadd.f32 %v1001, %v1002
        %v1004 = vadd.f32 %v925, %v926
        %v1005 = vadd.f32 %v1004, %v927
        %v1006 = vadd.f32 %v1005, %v928
        %v1007 = vadd.f32 %v1006, %v929
        %v1008 = vadd.f32 %v1007, %v930
        %v1009 = vadd.f32 %v1008, %v931
        %v1010 = vadd.f32 %v1009, %v932
        %v1011 = vrot.slane %v1010, 4
        %v1012 = vadd.f32 %v1010, %v1011
        %v1013 = vrot.slane %v1012, 2
        %v1014 = vadd.f32 %v1012, %v1013
        %v1015 = vrot.slane %v1014, 1
        %v1016 = vadd.f32 %v1014, %v1015
        %v1017 = vadd.f32 %v933, %v934
        %v1018 = vadd.f32 %v1017, %v935
        %v1019 = vadd.f32 %v1018, %v936
        %v1020 = vadd.f32 %v1019, %v937
        %v1021 = vadd.f32 %v1020, %v938
        %v1022 = vadd.f32 %v1021, %v939
        %v1023 = vadd.f32 %v1022, %v940
        %v1024 = vrot.slane %v1023, 4
        %v1025 = vadd.f32 %v1023, %v1024
        %v1026 = vrot.slane %v1025, 2
        %v1027 = vadd.f32 %v1025, %v1026
        %v1028 = vrot.slane %v1027, 1
        %v1029 = vadd.f32 %v1027, %v1028
        %v1030 = vadd.f32 %v941, %v942
        %v1031 = vadd.f32 %v1030, %v943
        %v1032 = vadd.f32 %v1031, %v944
        %v1033 = vadd.f32 %v1032, %v945
        %v1034 = vadd.f32 %v1033, %v946
        %v1035 = vadd.f32 %v1034, %v947
        %v1036 = vadd.f32 %v1035, %v948
        %v1037 = vrot.slane %v1036, 4
        %v1038 = vadd.f32 %v1036, %v1037
        %v1039 = vrot.slane %v1038, 2
        %v1040 = vadd.f32 %v1038, %v1039
        %v1041 = vrot.slane %v1040, 1
        %v1042 = vadd.f32 %v1040, %v1041
        %v1043 = vadd.f32 %v949, %v950
        %v1044 = vadd.f32 %v1043, %v951
        %v1045 = vadd.f32 %v1044, %v952
        %v1046 = vadd.f32 %v1045, %v953
        %v1047 = vadd.f32 %v1046, %v954
        %v1048 = vadd.f32 %v1047, %v955
        %v1049 = vadd.f32 %v1048, %v956
        %v1050 = vrot.slane %v1049, 4
        %v1051 = vadd.f32 %v1049, %v1050
        %v1052 = vrot.slane %v1051, 2
        %v1053 = vadd.f32 %v1051, %v1052
        %v1054 = vrot.slane %v1053, 1
        %v1055 = vadd.f32 %v1053, %v1054
        %v1056 = vadd.f32 %v957, %v958
        %v1057 = vadd.f32 %v1056, %v959
        %v1058 = vadd.f32 %v1057, %v960
        %v1059 = vadd.f32 %v1058, %v961
        %v1060 = vadd.f32 %v1059, %v962
        %v1061 = vadd.f32 %v1060, %v963
        %v1062 = vadd.f32 %v1061, %v964
        %v1063 = vrot.slane %v1062, 4
        %v1064 = vadd.f32 %v1062, %v1063
        %v1065 = vrot.slane %v1064, 2
        %v1066 = vadd.f32 %v1064, %v1065
        %v1067 = vrot.slane %v1066, 1
        %v1068 = vadd.f32 %v1066, %v1067
        %v1070 = vrot.slane %v556, 1
        %v1071 = vrot.slane %v556, 2
        %v1072 = vrot.slane %v556, 3
        %v1073 = vrot.slane %v556, 4
        %v1074 = vrot.slane %v556, 5
        %v1075 = vrot.slane %v556, 6
        %v1076 = vrot.slane %v556, 7
        %v1085 = vadd.f32 %v977, %v556
        %v1086 = vadd.f32 %v990, %v1070
        %v1087 = vadd.f32 %v1003, %v1071
        %v1088 = vadd.f32 %v1016, %v1072
        %v1089 = vadd.f32 %v1029, %v1073
        %v1090 = vadd.f32 %v1042, %v1074
        %v1091 = vadd.f32 %v1055, %v1075
        %v1092 = vadd.f32 %v1068, %v1076
        %v1093 = vmul.f32 %v1085, 0.17677669
        %v1094 = vmul.f32 %v1086, 0.17677669
        %v1095 = vmul.f32 %v1087, 0.17677669
        %v1096 = vmul.f32 %v1088, 0.17677669
        %v1097 = vmul.f32 %v1089, 0.17677669
        %v1098 = vmul.f32 %v1090, 0.17677669
        %v1099 = vmul.f32 %v1091, 0.17677669
        %v1100 = vmul.f32 %v1092, 0.17677669
        %v1101 = vld [vmem:[%s404] sm:$0xff]
        %v1102 = vld [vmem:[#allocation8] sm:$0xff]
        %v1103 = vld [vmem:[#allocation8 + $0x8] sm:$0xff]
        %v1104 = vld [vmem:[#allocation8 + $0x10] sm:$0xff]
        %v1105 = vld [vmem:[#allocation8 + $0x18] sm:$0xff]
        %v1106 = vld [vmem:[#allocation8 + $0x20] sm:$0xff]
        %v1107 = vld [vmem:[#allocation8 + $0x28] sm:$0xff]
        %v1108 = vld [vmem:[#allocation8 + $0x30] sm:$0xff]
        %v1109 = vld [vmem:[#allocation8 + $0x38] sm:$0xff]
        %v1110 = vld [vmem:[#allocation8 + $0x40] sm:$0xff]
        %v1111 = vld [vmem:[#allocation8 + $0x48] sm:$0xff]
        %v1112 = vld [vmem:[#allocation8 + $0x50] sm:$0xff]
        %v1113 = vld [vmem:[#allocation8 + $0x58] sm:$0xff]
        %v1114 = vld [vmem:[#allocation8 + $0x60] sm:$0xff]
        %v1115 = vld [vmem:[#allocation8 + $0x68] sm:$0xff]
        %v1116 = vld [vmem:[#allocation8 + $0x70] sm:$0xff]
        %v1117 = vld [vmem:[#allocation8 + $0x78] sm:$0xff]
        %v1118 = vld [vmem:[%s7] sm:$0x1]
        %v1120 = vlaneseq
        %v1121 = vshrl.u32 %v1120, 7
        %v1122 = vsub.s32 0, %v1121
        %v1123 = vrot.slane %v1118, %v1122
        %1125 = vmatprep.subr.mxu0 0.0
        %1126 = vmatpush1.msra.mxu0 %v1117
        %1127 = vmatprep.subr.mxu0 0.0
        %1128 = vmatpush1.msra.mxu0 %v1116
        %1129 = vmatprep.subr.mxu0 0.0
        %1130 = vmatpush1.msra.mxu0 %v1115
        %1131 = vmatprep.subr.mxu0 0.0
        %1132 = vmatpush1.msra.mxu0 %v1114
        %1133 = vmatprep.subr.mxu0 0.0
        %1134 = vmatpush1.msra.mxu0 %v1113
        %1135 = vmatprep.subr.mxu0 0.0
        %1136 = vmatpush1.msra.mxu0 %v1112
        %1137 = vmatprep.subr.mxu0 0.0
        %1138 = vmatpush1.msra.mxu0 %v1111
        %1139 = vmatprep.subr.mxu0 0.0
        %1140 = vmatpush1.msra.mxu0 %v1110
        %1141 = vmatprep.subr.mxu0 0.0
        %1142 = vmatpush1.msra.mxu0 %v1109
        %1143 = vmatprep.subr.mxu0 0.0
        %1144 = vmatpush1.msra.mxu0 %v1108
        %1145 = vmatprep.subr.mxu0 0.0
        %1146 = vmatpush1.msra.mxu0 %v1107
        %1147 = vmatprep.subr.mxu0 0.0
        %1148 = vmatpush1.msra.mxu0 %v1106
        %1149 = vmatprep.subr.mxu0 0.0
        %1150 = vmatpush1.msra.mxu0 %v1105
        %1151 = vmatprep.subr.mxu0 0.0
        %1152 = vmatpush1.msra.mxu0 %v1104
        %1153 = vmatprep.subr.mxu0 0.0
        %1154 = vmatpush1.msra.mxu0 %v1103
        %1155 = vmatprep.subr.mxu0 0.0
        %1156 = vmatpush1.msra.mxu0 %v1102
        %1157 = vmatprep.subr.mxu0 0.0
        %1158 = vmatpush2.msra.mxu0 0.0
        %1159 = vmatprep.subr.mxu0 0.0
        %1160 = vmatpush2.msra.mxu0 0.0
        %1161 = vmatprep.subr.mxu0 0.0
        %1162 = vmatpush2.msra.mxu0 0.0
        %1163 = vmatprep.subr.mxu0 0.0
        %1164 = vmatpush2.msra.mxu0 0.0
        %1165 = vmatprep.subr.mxu0 0.0
        %1166 = vmatpush2.msra.mxu0 0.0
        %1167 = vmatprep.subr.mxu0 0.0
        %1168 = vmatpush2.msra.mxu0 0.0
        %1169 = vmatprep.subr.mxu0 0.0
        %1170 = vmatpush2.msra.mxu0 0.0
        %1171 = vmatprep.subr.mxu0 0.0
        %1172 = vmatpush2.msra.mxu0 0.0
        %1173 = vmatprep.subr.mxu0 0.0
        %1174 = vmatpush2.msra.mxu0 0.0
        %1175 = vmatprep.subr.mxu0 0.0
        %1176 = vmatpush2.msra.mxu0 0.0
        %1177 = vmatprep.subr.mxu0 0.0
        %1178 = vmatpush2.msra.mxu0 0.0
        %1179 = vmatprep.subr.mxu0 0.0
        %1180 = vmatpush2.msra.mxu0 0.0
        %1181 = vmatprep.subr.mxu0 0.0
        %1182 = vmatpush2.msra.mxu0 0.0
        %1183 = vmatprep.subr.mxu0 0.0
        %1184 = vmatpush2.msra.mxu0 0.0
        %1185 = vmatprep.subr.mxu0 0.0
        %1186 = vmatpush2.msra.mxu0 0.0
        %1187 = vmatprep.subr.mxu0 0.0
        %1188 = vmatpush2.msra.mxu0 0.0
        %1189 = vmatprep.mubr.f32.mxu0 0.0
        %1190 = vmatmul.mubr.f32.gmra.mxu0 %v1101
        %v1191 = vpop.f32.mrf.mxu0
        %v1192 = vadd.f32 %v1123, %v1191
        %v1193 = vpop.f32.mrf.mxu0
        %1194 = vdwg.mxu0
        %v1203 = vrot.slane %v1094, 7
        %vm1204 = vcmask 1041409
        %v1205 = vsel %vm1204, %v1203, %v1093
        %v1206 = vrot.slane %v1095, 6
        %vm1207 = vcmask 1042434
        %v1208 = vsel %vm1207, %v1206, %v1205
        %v1209 = vrot.slane %v1096, 5
        %vm1210 = vcmask 1043459
        %v1211 = vsel %vm1210, %v1209, %v1208
        %v1212 = vrot.slane %v1097, 4
        %vm1213 = vcmask 1044484
        %v1214 = vsel %vm1213, %v1212, %v1211
        %v1215 = vrot.slane %v1098, 3
        %vm1216 = vcmask 1045509
        %v1217 = vsel %vm1216, %v1215, %v1214
        %v1218 = vrot.slane %v1099, 2
        %vm1219 = vcmask 1046534
        %v1220 = vsel %vm1219, %v1218, %v1217
        %v1221 = vrot.slane %v1100, 1
        %vm1222 = vcmask 1047559
        %v1223 = vsel %vm1222, %v1221, %v1220
        %v1225 = vmul.f32 %v1192, %v1223
        %v1226 = vlaneseq
        %v1227 = vand.u32 %v1226, 127
        %v1228 = vld [vmem:[%s466] sm:$0xff]
        %1229 = vset.pattern.permute.xlu0 0
        %1230 = vperm.xlu0 %1229, %v1228
        %v1231 = vpop.permute.xlu0 %1230
        %vm1232 = vcmp.ge.s32.totalorder %v1227, %v1231
        %v1233 = vsel %vm1232, -10000.0, %v1225
        %1234 = vst [vmem:[%s454] sm:$0xff] %v1233
        %vm1235 = vcmp.ge.s32.totalorder %v1227, 96
        %v1236 = vsel %vm1235, -inf, %v1233
        %1237 = vmax.xlane.f32.xlu0 %v1236
        %v1238 = vpop.xlane.xlu0 %1237
        %v1239 = vsub.f32 %v1236, %v1238
        %v1240 = vmul.f32 %v1239, 1.442695
        %v1241 = vpow.pop %v1240
        %1242 = vadd.xlane.f32.xlu0 %v1241
        %v1243 = vpop.xlane.xlu0 %1242
        %v1244 = vrcp.pop %v1243
        %v1245 = vmul.f32 %v1241, %v1244
        %1246 = vst [vmem:[%s461] sm:$0xff] %v1245
        %s1247 = sand.u32 %s230, 1
        %s1248 = scalar_lea.sflag [#allocation4], %s1247
        %s1249 = sand.u32 %s230, 1
        %s1250 = smul.addr %s1249, 8
        %s1251 = scalar_lea.vmem [#allocation10], %s1250
        %s1252 = sand.u32 %s256, 1
        %s1253 = scalar_lea.sflag [#allocation12], %s1252
        %s1254 = sand.u32 %s256, 1
        %s1255 = smul.addr %s1254, 8
        %s1256 = scalar_lea.vmem [#allocation11], %s1255
        // Predicated region
        $region69: #{tpu_custom_call.1} parent=51 // pred_check
          %p1257 = pneg %p240
        $region70: #{tpu_custom_call.1} parent=51 // pred_check_branch
          %1259 = sbr.rel (%p1257) target = $region72
        $region71: #{tpu_custom_call.1} parent=51 // pred_region
          %s1261 = ssub.s32 128, 128
          %1262 = vsyncadd %s1248, %s1261
          %s1263 = smul.addr %s34, 128
          %s1264 = scalar_lea.hbm %s8, %s1263
          %s1266 = sshll.u32 %s1251, 4
          %s1267 = int_to_ptr.vmem [resolvable:$true] %s1266
          %1269 = dma.vmem_to_hbm [thread:$0]  %s1267, 128, %s1264, %s1248
        $region72: #{tpu_custom_call.1} parent=51 // pred_fallthru
          _
        // Predicated region
        $region73: #{tpu_custom_call.1} parent=51 // pred_check
          %p1270 = pneg %p266
        $region74: #{tpu_custom_call.1} parent=51 // pred_check_branch
          %1272 = sbr.rel (%p1270) target = $region76
        $region75: #{tpu_custom_call.1} parent=51 // pred_region
          %s1274 = ssub.s32 128, 128
          %1275 = vsyncadd %s1253, %s1274
          %s1276 = smul.addr %s34, 128
          %s1277 = scalar_lea.hbm %s9, %s1276
          %s1279 = sshll.u32 %s1256, 4
          %s1280 = int_to_ptr.vmem [resolvable:$true] %s1279
          %1282 = dma.vmem_to_hbm [thread:$0]  %s1280, 128, %s1277, %s1253
        $region76: #{tpu_custom_call.1} parent=51 // pred_fallthru
          _
      $region52: #{tpu_custom_call.1} parent=5 // pred_fallthru
        _
      %p1283 = scmp.le.s32.totalorder 2, %s29
      // Predicated region
      $region77: #{tpu_custom_call.1} parent=5 // pred_check
        %p1284 = pneg %p1283
      $region78: #{tpu_custom_call.1} parent=5 // pred_check_branch
        %1286 = sbr.rel (%p1284) target = $region80
      $region79: #{tpu_custom_call.1} parent=5 // pred_region
        %s1287 = ssub.s32 %s29, 2
        // Predicated region
        $region81: #{tpu_custom_call.1} parent=79 // pred_check
          %p1288 = pneg %p246
        $region82: #{tpu_custom_call.1} parent=79 // pred_check_branch
          %1290 = sbr.rel (%p1288) target = $region84
        $region83: #{tpu_custom_call.1} parent=79 // pred_region
          %s1291 = sand.u32 %s231, 1
          %s1292 = scalar_lea.sflag [#allocation4], %s1291
          %s1293 = sand.u32 %s231, 1
          %s1294 = smul.addr %s1293, 8
          %s1295 = scalar_lea.vmem [#allocation10], %s1294
          %1296 = dma.done %s1292, 128
        $region84: #{tpu_custom_call.1} parent=79 // pred_fallthru
          _
        // Predicated region
        $region85: #{tpu_custom_call.1} parent=79 // pred_check
          %p1297 = pneg %p272
        $region86: #{tpu_custom_call.1} parent=79 // pred_check_branch
          %1299 = sbr.rel (%p1297) target = $region88
        $region87: #{tpu_custom_call.1} parent=79 // pred_region
          %s1300 = sand.u32 %s257, 1
          %s1301 = scalar_lea.sflag [#allocation12], %s1300
          %s1302 = sand.u32 %s257, 1
          %s1303 = smul.addr %s1302, 8
          %s1304 = scalar_lea.vmem [#allocation11], %s1303
          %1305 = dma.done %s1301, 128
        $region88: #{tpu_custom_call.1} parent=79 // pred_fallthru
          _
      $region80: #{tpu_custom_call.1} parent=5 // pred_fallthru
        _
    $region6: #{tpu_custom_call.1} parent=1 // loop_footer
      %s33 = sadd.s32 1, %s29
    $region7: #{tpu_custom_call.1} parent=1 // loop_footer_branch
      %28 = sbr.rel target = $region3
    $region8: #{tpu_custom_call.1} parent=1 // loop_exit
      _
    %1306 = vsyncpa [#allocation3], 1
    %s1307 = scalar_lea.sflag [#allocation3], 1
    %1308 = vsyncpa %s1307, 1
    %1309 = vsyncpa [#allocation6], 1
    %s1310 = scalar_lea.sflag [#allocation6], 1
    %1311 = vsyncpa %s1310, 1
    %1312 = vsyncpa [#allocation9], 1
    %1313 = vsyncpa [#allocation4], 1
    %s1314 = scalar_lea.sflag [#allocation4], 1
    %1315 = vsyncpa %s1314, 1
    %1316 = vsyncpa [#allocation12], 1
    %s1317 = scalar_lea.sflag [#allocation12], 1
    %1318 = vsyncpa %s1317, 1

</llo_original>
